<compile_context>
chip_gen: v7x
topology: tpu7x:2x2x1
jax: 0.10.0
libtpu: 0.0.40
codegen_flags: <defaults>
</compile_context>

<pallas_src>
import math
from functools import partial

import jax
import jax.numpy as jnp
from jax.experimental import pallas as pl
from jax.experimental.pallas import tpu as pltpu


def _mha_kernel(gamma_ref,                          # SMEM (H,) f32 = -softplus(gammas)
                q_ref, k_ref, v_ref,                # (1,tq,emb) / (1,seq,emb) cdt
                wq_ref, wk_ref, wv_ref, wo_ref,     # (emb,emb) cdt, resident
                bq_ref, bk_ref, bv_ref, bo_ref,     # (1,emb) f32, resident
                mask_ref,                           # (tq,seq) f32 (rows of the mask)
                out_ref,                            # (1,tq,emb) f32
                kproj_ref, vproj_ref,               # VMEM (seq,emb) cdt  K/V proj cache
                out_acc_ref,                        # VMEM (tq,emb) f32   out-proj accumulator
                *, n_heads, d_k, zero_pad, approx_recip):
    f32 = jnp.float32
    cdt = wq_ref.dtype                              # MXU operand dtype
    tq = q_ref.shape[1]
    seq = k_ref.shape[1]
    q_start = pl.program_id(1) * tq

    # ---- K/V projections: computed once per batch element, reused by all q-tiles ----
    @pl.when(pl.program_id(1) == 0)
    def _():
        kproj_ref[...] = (jnp.dot(k_ref[0], wk_ref[...], preferred_element_type=f32)
                          + bk_ref[...]).astype(cdt)
        vproj_ref[...] = (jnp.dot(v_ref[0], wv_ref[...], preferred_element_type=f32)
                          + bv_ref[...]).astype(cdt)

    # ---- Q projection for this q-tile (full width, all heads at once) ----
    qh_c = (jnp.dot(q_ref[0], wq_ref[...], preferred_element_type=f32)
            + bq_ref[...]).astype(cdt)

    # ---- per-grid-step constants shared by every head ----
    mask = mask_ref[...]
    masked0 = mask == 0.0
    neg_big = jnp.float32(-1e32)
    col = jax.lax.broadcasted_iota(jnp.int32, (tq, seq), 1)             # key index
    row = jax.lax.broadcasted_iota(jnp.int32, (tq, seq), 0) + q_start   # global query index
    position_effect = jnp.abs(col - row).astype(f32)
    first_q_row = row == 0                                              # zero_pad mask
    scale = jnp.float32(1.0 / math.sqrt(d_k))

    def softmax_rows(e):
        s = jnp.sum(e, axis=-1, keepdims=True)
        if approx_recip:
            return e * pl.reciprocal(s, approx=True)
        return e / s

    def prefix_sum_keys(x):
        # Inclusive prefix sum along the key axis via a Hillis-Steele scan:
        # ceil(log2(seq)) steps of roll (XLU slot) + add (VPU slot), instead of the
        # old O(seq^2)-per-row f32 matmul.
        acc = x
        d = 1
        while d < seq:
            shifted = pltpu.roll(acc, d, axis=1)         # out[:, j] = acc[:, j-d] (wrapped)
            shifted = jnp.where(col < d, 0.0, shifted)   # zero the wrapped lanes
            acc = acc + shifted
            d *= 2
        return acc

    # TODO(synk): switch to lax.fori_loop + pl.ds head slicing if vreg/VMEM pressure
    # from the unrolled head loop shows up in the bundle dump at large shapes.
    for h in range(n_heads):
        lo = h * d_k
        qh = qh_c[:, lo:lo + d_k]                        # (tq, d_k)
        kh = kproj_ref[:, lo:lo + d_k]                   # (seq, d_k)
        vh = vproj_ref[:, lo:lo + d_k]                   # (seq, d_k)

        # q @ k^T, contracting on d_k (no explicit transpose)
        scores = jax.lax.dot_general(
            qh, kh, (((1,), (1,)), ((), ())),
            preferred_element_type=f32) * scale          # (tq, seq) f32

        # ---- distance statistics (torch.no_grad block) -- f32 VPU/EUP math ----
        s1 = jnp.where(masked0, neg_big, scores)
        e1 = jnp.exp(s1 - jnp.max(s1, axis=-1, keepdims=True))
        p1 = softmax_rows(e1) * mask
        distcum = prefix_sum_keys(p1)                    # cumsum along keys
        disttotal = jnp.sum(p1, axis=-1, keepdims=True)
        dist_scores = jnp.sqrt(jnp.maximum((disttotal - distcum) * position_effect, 0.0))

        gamma = gamma_ref[h]                             # scalar -softplus(gammas[h])
        # upper clip at 1e5 is dead: gamma <= 0 and dist >= 0 => exp(.) <= 1
        total_effect = jnp.maximum(jnp.exp(dist_scores * gamma), 1e-5)

        # ---- final attention weights ----
        s2 = jnp.where(masked0, neg_big, scores * total_effect)
        e2 = jnp.exp(s2 - jnp.max(s2, axis=-1, keepdims=True))
        p2 = softmax_rows(e2)
        if zero_pad:
            p2 = jnp.where(first_q_row, 0.0, p2)         # zero global query row 0
        # nn.Dropout is identity in eval mode.

        head_out = jnp.dot(p2.astype(cdt), vh, preferred_element_type=f32)   # (tq, d_k)

        # Lane-dense out-projection accumulation: head_out @ Wo[lo:lo+d_k, :].
        contrib = jnp.dot(head_out.astype(cdt), wo_ref[lo:lo + d_k, :],
                          preferred_element_type=f32)    # (tq, emb)
        if h == 0:
            out_acc_ref[...] = contrib
        else:
            out_acc_ref[...] += contrib

    out_ref[0] = (out_acc_ref[...] + bo_ref[...]).astype(out_ref.dtype)


def multi_head_attention(q, k, v, mask, params, *, n_heads, d_k, zero_pad, kq_same,
                         precise=False, q_block=None, vmem_limit_bytes=None):
    bs, seq, emb = q.shape
    H = n_heads
    assert H * d_k == emb
    f32 = jnp.float32
    cdt = f32 if precise else jnp.bfloat16

    if q_block is None:
        # Keep the ~10 live (q_block, seq) f32 per-head temporaries inside a modest
        # VMEM budget: full-seq tiles for short sequences, 128-wide tiles for very
        # long ones (v7x only has 64 MiB of VMEM; v6e can afford 256-512).
        if seq <= 512:
            q_block = seq
        elif seq <= 1024:
            q_block = 256
        else:
            q_block = 128
    if seq % q_block != 0:
        q_block = seq
    nq = seq // q_block

    # torch Linear computes x @ W.T + b  ->  effective weight W_eff = W.T
    wk_eff = params["wk"].T.astype(cdt)
    wv_eff = params["wv"].T.astype(cdt)
    if kq_same:
        wq_eff, bq_raw = wk_eff, params["bk"]            # kq_same=True: q uses k_linear
    else:
        wq_eff, bq_raw = params["wq"].T.astype(cdt), params["bq"]
    wo_eff = params["wo"].T.astype(cdt)

    bq = bq_raw.reshape(1, emb).astype(f32)
    bk = params["bk"].reshape(1, emb).astype(f32)
    bv = params["bv"].reshape(1, emb).astype(f32)
    bo = params["bo"].reshape(1, emb).astype(f32)
    mask2d = mask.reshape(seq, seq).astype(f32)
    # -softplus(gammas): tiny (H,) host-side op, overflow-safe; lands in SMEM.
    neg_gamma = (-jax.nn.softplus(params["gammas"].reshape(H))).astype(f32)

    kernel = partial(_mha_kernel, n_heads=H, d_k=d_k, zero_pad=zero_pad,
                     approx_recip=not precise)

    grid_spec = pltpu.PrefetchScalarGridSpec(
        num_scalar_prefetch=1,                            # neg_gamma -> SMEM
        grid=(bs, nq),
        in_specs=[
            pl.BlockSpec((1, q_block, emb), lambda b, qi, g: (b, qi, 0)),   # q tile
            pl.BlockSpec((1, seq, emb),     lambda b, qi, g: (b, 0, 0)),    # k (full seq)
            pl.BlockSpec((1, seq, emb),     lambda b, qi, g: (b, 0, 0)),    # v (full seq)
            pl.BlockSpec((emb, emb),        lambda b, qi, g: (0, 0)),       # wq (resident)
            pl.BlockSpec((emb, emb),        lambda b, qi, g: (0, 0)),       # wk
            pl.BlockSpec((emb, emb),        lambda b, qi, g: (0, 0)),       # wv
            pl.BlockSpec((emb, emb),        lambda b, qi, g: (0, 0)),       # wo
            pl.BlockSpec((1, emb),          lambda b, qi, g: (0, 0)),       # bq
            pl.BlockSpec((1, emb),          lambda b, qi, g: (0, 0)),       # bk
            pl.BlockSpec((1, emb),          lambda b, qi, g: (0, 0)),       # bv
            pl.BlockSpec((1, emb),          lambda b, qi, g: (0, 0)),       # bo
            pl.BlockSpec((q_block, seq),    lambda b, qi, g: (qi, 0)),      # mask rows
        ],
        out_specs=pl.BlockSpec((1, q_block, emb), lambda b, qi, g: (b, qi, 0)),
        scratch_shapes=[
            pltpu.VMEM((seq, emb), cdt),                  # K projection cache
            pltpu.VMEM((seq, emb), cdt),                  # V projection cache
            pltpu.VMEM((q_block, emb), f32),              # out-projection accumulator
        ],
    )

    return pl.pallas_call(
        kernel,
        out_shape=jax.ShapeDtypeStruct((bs, seq, emb), f32),
        grid_spec=grid_spec,
        compiler_params=pltpu.CompilerParams(
            # qi must be "arbitrary": the K/V cache relies on sequential iteration
            # (recomputed when qi == 0); batch stays megacore-parallel.
            dimension_semantics=("parallel", "arbitrary"),
            vmem_limit_bytes=vmem_limit_bytes),
    )(neg_gamma,
      q.astype(cdt), k.astype(cdt), v.astype(cdt),
      wq_eff, wk_eff, wv_eff, wo_eff,
      bq, bk, bv, bo, mask2d)


def reference_mha(q, k, v, mask, params, *, n_heads, d_k, zero_pad, kq_same):
    """Pure-JAX mirror of the PyTorch forward (eval mode)."""
    bs, seq, emb = q.shape
    H = n_heads

    def lin(x, W, b):
        return x @ W.T + b

    def heads(x):
        return x.reshape(bs, seq, H, d_k).transpose(0, 2, 1, 3)

    K = heads(lin(k, params["wk"], params["bk"]))
    Q = heads(lin(q, params["wk"], params["bk"]) if kq_same
              else lin(q, params["wq"], params["bq"]))
    V = heads(lin(v, params["wv"], params["bv"]))

    scores = jnp.einsum("bhqd,bhkd->bhqk", Q, K) / math.sqrt(d_k)
    m = mask.astype(jnp.float32)
    s1 = jnp.where(m == 0, -1e32, scores)
    p1 = jax.nn.softmax(s1, axis=-1) * m
    distcum = jnp.cumsum(p1, axis=-1)
    disttotal = jnp.sum(p1, axis=-1, keepdims=True)
    x1 = jnp.arange(seq)
    pos = jnp.abs(x1[None, :] - x1[:, None]).astype(jnp.float32)[None, None]
    dist = jnp.sqrt(jnp.maximum((disttotal - distcum) * pos, 0.0))
    gamma = -jax.nn.softplus(params["gammas"])[None]        # (1, H, 1, 1)
    te = jnp.clip(jnp.exp(dist * gamma), 1e-5, 1e5)
    s2 = jnp.where(m == 0, -1e32, scores * te)
    p2 = jax.nn.softmax(s2, axis=-1)
    if zero_pad:
        p2 = p2.at[:, :, 0, :].set(0.0)
    out_h = jnp.einsum("bhqk,bhkd->bhqd", p2, V)
    concat = out_h.transpose(0, 2, 1, 3).reshape(bs, seq, emb)
    return concat @ params["wo"].T + params["bo"]


if __name__ == "__main__":
    bs, seq, emb, H = 2, 8, 32, 4
    d_k = emb // H
    kq_same = True
    zero_pad = True

    key = jax.random.PRNGKey(0)
    keys = jax.random.split(key, 9)

    def xavier(kk, shape):
        fan_out, fan_in = shape
        bound = math.sqrt(6.0 / (fan_in + fan_out))
        return jax.random.uniform(kk, shape, jnp.float32, -bound, bound)

    # deterministic synthetic parameters (shapes from MultiHeadAttention.__init__)
    params = {
        "wk": xavier(keys[0], (emb, emb)), "bk": jnp.zeros((emb,), jnp.float32),
        "wq": xavier(keys[1], (emb, emb)), "bq": jnp.zeros((emb,), jnp.float32),
        "wv": xavier(keys[2], (emb, emb)), "bv": jnp.zeros((emb,), jnp.float32),
        "wo": xavier(keys[3], (emb, emb)), "bo": jnp.zeros((emb,), jnp.float32),
        "gammas": 0.1 * jax.random.uniform(keys[4], (H, 1, 1), jnp.float32, -1.0, 1.0),
    }

    q = jax.random.normal(keys[5], (bs, seq, emb), jnp.float32)
    k = jax.random.normal(keys[6], (bs, seq, emb), jnp.float32)
    v = jax.random.normal(keys[7], (bs, seq, emb), jnp.float32)
    # causal mask (attend to self and past), shape (1, 1, seq, seq) as in AKT
    mask = jnp.tril(jnp.ones((seq, seq), jnp.float32))[None, None]

    ref = reference_mha(q, k, v, mask, params, n_heads=H, d_k=d_k,
                        zero_pad=zero_pad, kq_same=kq_same)

    # 1) precise mode: f32 MXU operands + exact softmax division -> tight check
    out_f32 = multi_head_attention(q, k, v, mask, params, n_heads=H, d_k=d_k,
                                   zero_pad=zero_pad, kq_same=kq_same, precise=True)
    out_f32 = jax.block_until_ready(out_f32)
    err_f32 = float(jnp.max(jnp.abs(out_f32 - ref)))
    assert jnp.allclose(out_f32, ref, atol=1e-4, rtol=1e-4), f"f32 max abs err {err_f32}"

    # 2) performance mode: bf16 MXU operands + approx reciprocal softmax -> looser check
    out_bf16 = multi_head_attention(q, k, v, mask, params, n_heads=H, d_k=d_k,
                                    zero_pad=zero_pad, kq_same=kq_same, precise=False)
    out_bf16 = jax.block_until_ready(out_bf16)
    err_bf16 = float(jnp.max(jnp.abs(out_bf16 - ref)))
    assert jnp.allclose(out_bf16, ref, atol=1e-1, rtol=5e-2), f"bf16 max abs err {err_bf16}"

    print("KERNEL_OK")
</pallas_src>

<mosaic_0001>
module attributes {stable_mosaic.version = 11 : i64} {
  func.func @_mha_kernel(%arg0: i32, %arg1: i32, %arg2: memref<4xf32, #tpu.memory_space<smem>>, %arg3: memref<1x8x32xf32, #tpu.memory_space<vmem>>, %arg4: memref<1x8x32xf32, #tpu.memory_space<vmem>>, %arg5: memref<1x8x32xf32, #tpu.memory_space<vmem>>, %arg6: memref<32x32xf32, #tpu.memory_space<vmem>>, %arg7: memref<32x32xf32, #tpu.memory_space<vmem>>, %arg8: memref<32x32xf32, #tpu.memory_space<vmem>>, %arg9: memref<32x32xf32, #tpu.memory_space<vmem>>, %arg10: memref<1x32xf32, #tpu.memory_space<vmem>>, %arg11: memref<1x32xf32, #tpu.memory_space<vmem>>, %arg12: memref<1x32xf32, #tpu.memory_space<vmem>>, %arg13: memref<1x32xf32, #tpu.memory_space<vmem>>, %arg14: memref<8x8xf32, #tpu.memory_space<vmem>>, %arg15: memref<1x8x32xf32, #tpu.memory_space<vmem>>, %arg16: memref<8x32xf32, #tpu.memory_space<vmem>>, %arg17: memref<8x32xf32, #tpu.memory_space<vmem>>, %arg18: memref<8x32xf32, #tpu.memory_space<vmem>>) attributes {dimension_semantics = [#tpu.dimension_semantics<parallel>, #tpu.dimension_semantics<arbitrary>], iteration_bounds = array<i64: 2, 1>, scalar_prefetch = 1 : i64, scratch_operands = 3 : i64, tpu.core_type = #tpu.core_type<tc>, window_params = [{transform_indices = @transform_0, window_bounds = array<i64: 1, 8, 32>}, {transform_indices = @transform_1, window_bounds = array<i64: 1, 8, 32>}, {transform_indices = @transform_2, window_bounds = array<i64: 1, 8, 32>}, {pipeline_mode = #tpu.pipeline_mode<synchronous>, transform_indices = @transform_3, window_bounds = array<i64: 32, 32>}, {pipeline_mode = #tpu.pipeline_mode<synchronous>, transform_indices = @transform_4, window_bounds = array<i64: 32, 32>}, {pipeline_mode = #tpu.pipeline_mode<synchronous>, transform_indices = @transform_5, window_bounds = array<i64: 32, 32>}, {pipeline_mode = #tpu.pipeline_mode<synchronous>, transform_indices = @transform_6, window_bounds = array<i64: 32, 32>}, {pipeline_mode = #tpu.pipeline_mode<synchronous>, transform_indices = @transform_7, window_bounds = array<i64: 1, 32>}, {pipeline_mode = #tpu.pipeline_mode<synchronous>, transform_indices = @transform_8, window_bounds = array<i64: 1, 32>}, {pipeline_mode = #tpu.pipeline_mode<synchronous>, transform_indices = @transform_9, window_bounds = array<i64: 1, 32>}, {pipeline_mode = #tpu.pipeline_mode<synchronous>, transform_indices = @transform_10, window_bounds = array<i64: 1, 32>}, {transform_indices = @transform_11, window_bounds = array<i64: 8, 8>}, {transform_indices = @transform_12, window_bounds = array<i64: 1, 8, 32>}]} {
    %c8_i32 = arith.constant 8 : i32
    %0 = arith.muli %arg1, %c8_i32 : i32
    %c0_i32 = arith.constant 0 : i32
    %1 = arith.cmpi eq, %arg1, %c0_i32 : i32
    %2 = arith.extui %1 : i1 to i32
    %c0_i32_0 = arith.constant 0 : i32
    %3 = arith.cmpi ne, %2, %c0_i32_0 : i32
    scf.if %3 {
      %c0_143 = arith.constant 0 : index
      %c0_144 = arith.constant 0 : index
      %c0_145 = arith.constant 0 : index
      %308 = vector.load %arg4[%c0_143, %c0_144, %c0_145] : memref<1x8x32xf32, #tpu.memory_space<vmem>>, vector<1x8x32xf32>
      %309 = vector.shape_cast %308 : vector<1x8x32xf32> to vector<8x32xf32>
      %c0_146 = arith.constant 0 : index
      %c0_147 = arith.constant 0 : index
      %310 = vector.load %arg7[%c0_146, %c0_147] : memref<32x32xf32, #tpu.memory_space<vmem>>, vector<32x32xf32>
      %cst_148 = arith.constant dense<0.000000e+00> : vector<8x32xf32>
      %311 = tpu.matmul %309, %310, %cst_148 {dimension_numbers = #tpu.dot_dimension_numbers<[1], [0], [0], [1], [0, 0, 1, 1], [], []>} : vector<8x32xf32>, vector<32x32xf32>, vector<8x32xf32> -> vector<8x32xf32>
      %c0_149 = arith.constant 0 : index
      %c0_150 = arith.constant 0 : index
      %312 = vector.load %arg11[%c0_149, %c0_150] : memref<1x32xf32, #tpu.memory_space<vmem>>, vector<1x32xf32>
      %313 = vector.broadcast %312 : vector<1x32xf32> to vector<8x32xf32>
      %314 = arith.addf %311, %313 : vector<8x32xf32>
      %c0_151 = arith.constant 0 : index
      %c0_152 = arith.constant 0 : index
      %315 = vector.load %arg16[%c0_151, %c0_152] : memref<8x32xf32, #tpu.memory_space<vmem>>, vector<8x32xf32>
      tpu.vector_store %arg16[%c0_151, %c0_152], %314 {strides = array<i32>} : memref<8x32xf32, #tpu.memory_space<vmem>>, vector<8x32xf32>,
      %c0_153 = arith.constant 0 : index
      %c0_154 = arith.constant 0 : index
      %c0_155 = arith.constant 0 : index
      %316 = vector.load %arg5[%c0_153, %c0_154, %c0_155] : memref<1x8x32xf32, #tpu.memory_space<vmem>>, vector<1x8x32xf32>
      %317 = vector.shape_cast %316 : vector<1x8x32xf32> to vector<8x32xf32>
      %c0_156 = arith.constant 0 : index
      %c0_157 = arith.constant 0 : index
      %318 = vector.load %arg8[%c0_156, %c0_157] : memref<32x32xf32, #tpu.memory_space<vmem>>, vector<32x32xf32>
      %cst_158 = arith.constant dense<0.000000e+00> : vector<8x32xf32>
      %319 = tpu.matmul %317, %318, %cst_158 {dimension_numbers = #tpu.dot_dimension_numbers<[1], [0], [0], [1], [0, 0, 1, 1], [], []>} : vector<8x32xf32>, vector<32x32xf32>, vector<8x32xf32> -> vector<8x32xf32>
      %c0_159 = arith.constant 0 : index
      %c0_160 = arith.constant 0 : index
      %320 = vector.load %arg12[%c0_159, %c0_160] : memref<1x32xf32, #tpu.memory_space<vmem>>, vector<1x32xf32>
      %321 = vector.broadcast %320 : vector<1x32xf32> to vector<8x32xf32>
      %322 = arith.addf %319, %321 : vector<8x32xf32>
      %c0_161 = arith.constant 0 : index
      %c0_162 = arith.constant 0 : index
      %323 = vector.load %arg17[%c0_161, %c0_162] : memref<8x32xf32, #tpu.memory_space<vmem>>, vector<8x32xf32>
      tpu.vector_store %arg17[%c0_161, %c0_162], %322 {strides = array<i32>} : memref<8x32xf32, #tpu.memory_space<vmem>>, vector<8x32xf32>,
    } else {
    }
    %c0 = arith.constant 0 : index
    %c0_1 = arith.constant 0 : index
    %c0_2 = arith.constant 0 : index
    %4 = vector.load %arg3[%c0, %c0_1, %c0_2] : memref<1x8x32xf32, #tpu.memory_space<vmem>>, vector<1x8x32xf32>
    %5 = vector.shape_cast %4 : vector<1x8x32xf32> to vector<8x32xf32>
    %c0_3 = arith.constant 0 : index
    %c0_4 = arith.constant 0 : index
    %6 = vector.load %arg6[%c0_3, %c0_4] : memref<32x32xf32, #tpu.memory_space<vmem>>, vector<32x32xf32>
    %cst = arith.constant dense<0.000000e+00> : vector<8x32xf32>
    %7 = tpu.matmul %5, %6, %cst {dimension_numbers = #tpu.dot_dimension_numbers<[1], [0], [0], [1], [0, 0, 1, 1], [], []>} : vector<8x32xf32>, vector<32x32xf32>, vector<8x32xf32> -> vector<8x32xf32>
    %c0_5 = arith.constant 0 : index
    %c0_6 = arith.constant 0 : index
    %8 = vector.load %arg10[%c0_5, %c0_6] : memref<1x32xf32, #tpu.memory_space<vmem>>, vector<1x32xf32>
    %9 = vector.broadcast %8 : vector<1x32xf32> to vector<8x32xf32>
    %10 = arith.addf %7, %9 : vector<8x32xf32>
    %c0_7 = arith.constant 0 : index
    %c0_8 = arith.constant 0 : index
    %11 = vector.load %arg14[%c0_7, %c0_8] : memref<8x8xf32, #tpu.memory_space<vmem>>, vector<8x8xf32>
    %cst_9 = arith.constant 0.000000e+00 : f32
    %12 = vector.broadcast %cst_9 : f32 to vector<8x8xf32>
    %13 = arith.cmpf oeq, %11, %12 : vector<8x8xf32>
    %14 = tpu.iota {dimensions = array<i32: 1>} : vector<8x8xi32>
    %15 = tpu.iota {dimensions = array<i32: 0>} : vector<8x8xi32>
    %16 = vector.broadcast %0 : i32 to vector<8x8xi32>
    %17 = arith.addi %15, %16 : vector<8x8xi32>
    %18 = arith.subi %14, %17 : vector<8x8xi32>
    %19 = math.absi %18 : vector<8x8xi32>
    %20 = arith.sitofp %19 : vector<8x8xi32> to vector<8x8xf32>
    %c0_i32_10 = arith.constant 0 : i32
    %21 = vector.broadcast %c0_i32_10 : i32 to vector<8x8xi32>
    %22 = arith.cmpi eq, %17, %21 : vector<8x8xi32>
    %23 = vector.extract_strided_slice %10 {offsets = [0, 0], sizes = [8, 8], strides = [1, 1]} : vector<8x32xf32> to vector<8x8xf32>
    %c0_11 = arith.constant 0 : index
    %c0_12 = arith.constant 0 : index
    %24 = vector.load %arg16[%c0_11, %c0_12] : memref<8x32xf32, #tpu.memory_space<vmem>>, vector<8x8xf32>
    %c0_13 = arith.constant 0 : index
    %c0_14 = arith.constant 0 : index
    %25 = vector.load %arg17[%c0_13, %c0_14] : memref<8x32xf32, #tpu.memory_space<vmem>>, vector<8x8xf32>
    %cst_15 = arith.constant dense<0.000000e+00> : vector<8x8xf32>
    %26 = tpu.matmul %23, %24, %cst_15 {dimension_numbers = #tpu.dot_dimension_numbers<[1], [1], [0], [0], [0, 0, 1, 0], [], []>} : vector<8x8xf32>, vector<8x8xf32>, vector<8x8xf32> -> vector<8x8xf32>
    %cst_16 = arith.constant 0.353553385 : f32
    %27 = vector.broadcast %cst_16 : f32 to vector<8x8xf32>
    %28 = arith.mulf %26, %27 : vector<8x8xf32>
    %cst_17 = arith.constant -1.000000e+32 : f32
    %29 = vector.broadcast %cst_17 : f32 to vector<8x8xf32>
    %30 = arith.select %13, %29, %28 : vector<8x8xi1>, vector<8x8xf32>
    %cst_18 = arith.constant dense<0xFF800000> : vector<8xf32>
    %31 = vector.multi_reduction <maximumf>, %30, %cst_18 [1] : vector<8x8xf32> to vector<8xf32>
    %32 = vector.shape_cast %31 : vector<8xf32> to vector<8x1xf32>
    %33 = vector.broadcast %32 : vector<8x1xf32> to vector<8x8xf32>
    %34 = arith.subf %30, %33 : vector<8x8xf32>
    %35 = math.exp %34 : vector<8x8xf32>
    %cst_19 = arith.constant dense<0.000000e+00> : vector<8xf32>
    %36 = vector.multi_reduction <add>, %35, %cst_19 [1] : vector<8x8xf32> to vector<8xf32>
    %37 = vector.shape_cast %36 : vector<8xf32> to vector<8x1xf32>
    %38 = vector.broadcast %37 : vector<8x1xf32> to vector<8x8xf32>
    %39 = arith.divf %35, %38 : vector<8x8xf32>
    %40 = arith.mulf %39, %11 : vector<8x8xf32>
    %c1_i32 = arith.constant 1 : i32
    %41 = tpu.dynamic_rotate %40 by %c1_i32 dim 1 : vector<8x8xf32>, i32 -> vector<8x8xf32>
    %c1_i32_20 = arith.constant 1 : i32
    %42 = vector.broadcast %c1_i32_20 : i32 to vector<8x8xi32>
    %43 = arith.cmpi slt, %14, %42 : vector<8x8xi32>
    %cst_21 = arith.constant 0.000000e+00 : f32
    %44 = vector.broadcast %cst_21 : f32 to vector<8x8xf32>
    %45 = arith.select %43, %44, %41 : vector<8x8xi1>, vector<8x8xf32>
    %46 = arith.addf %40, %45 : vector<8x8xf32>
    %c2_i32 = arith.constant 2 : i32
    %47 = tpu.dynamic_rotate %46 by %c2_i32 dim 1 : vector<8x8xf32>, i32 -> vector<8x8xf32>
    %c2_i32_22 = arith.constant 2 : i32
    %48 = vector.broadcast %c2_i32_22 : i32 to vector<8x8xi32>
    %49 = arith.cmpi slt, %14, %48 : vector<8x8xi32>
    %cst_23 = arith.constant 0.000000e+00 : f32
    %50 = vector.broadcast %cst_23 : f32 to vector<8x8xf32>
    %51 = arith.select %49, %50, %47 : vector<8x8xi1>, vector<8x8xf32>
    %52 = arith.addf %46, %51 : vector<8x8xf32>
    %c4_i32 = arith.constant 4 : i32
    %53 = tpu.dynamic_rotate %52 by %c4_i32 dim 1 : vector<8x8xf32>, i32 -> vector<8x8xf32>
    %c4_i32_24 = arith.constant 4 : i32
    %54 = vector.broadcast %c4_i32_24 : i32 to vector<8x8xi32>
    %55 = arith.cmpi slt, %14, %54 : vector<8x8xi32>
    %cst_25 = arith.constant 0.000000e+00 : f32
    %56 = vector.broadcast %cst_25 : f32 to vector<8x8xf32>
    %57 = arith.select %55, %56, %53 : vector<8x8xi1>, vector<8x8xf32>
    %58 = arith.addf %52, %57 : vector<8x8xf32>
    %cst_26 = arith.constant dense<0.000000e+00> : vector<8xf32>
    %59 = vector.multi_reduction <add>, %40, %cst_26 [1] : vector<8x8xf32> to vector<8xf32>
    %60 = vector.shape_cast %59 : vector<8xf32> to vector<8x1xf32>
    %61 = vector.broadcast %60 : vector<8x1xf32> to vector<8x8xf32>
    %62 = arith.subf %61, %58 : vector<8x8xf32>
    %63 = arith.mulf %62, %20 : vector<8x8xf32>
    %cst_27 = arith.constant 0.000000e+00 : f32
    %64 = vector.broadcast %cst_27 : f32 to vector<8x8xf32>
    %65 = arith.maximumf %63, %64 : vector<8x8xf32>
    %66 = math.sqrt %65 : vector<8x8xf32>
    %c0_28 = arith.constant 0 : index
    %67 = memref.load %arg2[%c0_28] : memref<4xf32, #tpu.memory_space<smem>>
    %68 = vector.broadcast %67 : f32 to vector<8x8xf32>
    %69 = arith.mulf %66, %68 : vector<8x8xf32>
    %70 = math.exp %69 : vector<8x8xf32>
    %cst_29 = arith.constant 9.99999974E-6 : f32
    %71 = vector.broadcast %cst_29 : f32 to vector<8x8xf32>
    %72 = arith.maximumf %70, %71 : vector<8x8xf32>
    %73 = arith.mulf %28, %72 : vector<8x8xf32>
    %cst_30 = arith.constant -1.000000e+32 : f32
    %74 = vector.broadcast %cst_30 : f32 to vector<8x8xf32>
    %75 = arith.select %13, %74, %73 : vector<8x8xi1>, vector<8x8xf32>
    %cst_31 = arith.constant dense<0xFF800000> : vector<8xf32>
    %76 = vector.multi_reduction <maximumf>, %75, %cst_31 [1] : vector<8x8xf32> to vector<8xf32>
    %77 = vector.shape_cast %76 : vector<8xf32> to vector<8x1xf32>
    %78 = vector.broadcast %77 : vector<8x1xf32> to vector<8x8xf32>
    %79 = arith.subf %75, %78 : vector<8x8xf32>
    %80 = math.exp %79 : vector<8x8xf32>
    %cst_32 = arith.constant dense<0.000000e+00> : vector<8xf32>
    %81 = vector.multi_reduction <add>, %80, %cst_32 [1] : vector<8x8xf32> to vector<8xf32>
    %82 = vector.shape_cast %81 : vector<8xf32> to vector<8x1xf32>
    %83 = vector.broadcast %82 : vector<8x1xf32> to vector<8x8xf32>
    %84 = arith.divf %80, %83 : vector<8x8xf32>
    %cst_33 = arith.constant 0.000000e+00 : f32
    %85 = vector.broadcast %cst_33 : f32 to vector<8x8xf32>
    %86 = arith.select %22, %85, %84 : vector<8x8xi1>, vector<8x8xf32>
    %cst_34 = arith.constant dense<0.000000e+00> : vector<8x8xf32>
    %87 = tpu.matmul %86, %25, %cst_34 {dimension_numbers = #tpu.dot_dimension_numbers<[1], [0], [0], [1], [0, 0, 1, 1], [], []>} : vector<8x8xf32>, vector<8x8xf32>, vector<8x8xf32> -> vector<8x8xf32>
    %c0_35 = arith.constant 0 : index
    %c0_36 = arith.constant 0 : index
    %88 = vector.load %arg9[%c0_35, %c0_36] : memref<32x32xf32, #tpu.memory_space<vmem>>, vector<8x32xf32>
    %cst_37 = arith.constant dense<0.000000e+00> : vector<8x32xf32>
    %89 = tpu.matmul %87, %88, %cst_37 {dimension_numbers = #tpu.dot_dimension_numbers<[1], [0], [0], [1], [0, 0, 1, 1], [], []>} : vector<8x8xf32>, vector<8x32xf32>, vector<8x32xf32> -> vector<8x32xf32>
    %c0_38 = arith.constant 0 : index
    %c0_39 = arith.constant 0 : index
    %90 = vector.load %arg18[%c0_38, %c0_39] : memref<8x32xf32, #tpu.memory_space<vmem>>, vector<8x32xf32>
    tpu.vector_store %arg18[%c0_38, %c0_39], %89 {strides = array<i32>} : memref<8x32xf32, #tpu.memory_space<vmem>>, vector<8x32xf32>,
    %91 = vector.extract_strided_slice %10 {offsets = [0, 8], sizes = [8, 8], strides = [1, 1]} : vector<8x32xf32> to vector<8x8xf32>
    %c0_40 = arith.constant 0 : index
    %c8 = arith.constant 8 : index
    %92 = vector.load %arg16[%c0_40, %c8] : memref<8x32xf32, #tpu.memory_space<vmem>>, vector<8x8xf32>
    %c0_41 = arith.constant 0 : index
    %c8_42 = arith.constant 8 : index
    %93 = vector.load %arg17[%c0_41, %c8_42] : memref<8x32xf32, #tpu.memory_space<vmem>>, vector<8x8xf32>
    %cst_43 = arith.constant dense<0.000000e+00> : vector<8x8xf32>
    %94 = tpu.matmul %91, %92, %cst_43 {dimension_numbers = #tpu.dot_dimension_numbers<[1], [1], [0], [0], [0, 0, 1, 0], [], []>} : vector<8x8xf32>, vector<8x8xf32>, vector<8x8xf32> -> vector<8x8xf32>
    %cst_44 = arith.constant 0.353553385 : f32
    %95 = vector.broadcast %cst_44 : f32 to vector<8x8xf32>
    %96 = arith.mulf %94, %95 : vector<8x8xf32>
    %cst_45 = arith.constant -1.000000e+32 : f32
    %97 = vector.broadcast %cst_45 : f32 to vector<8x8xf32>
    %98 = arith.select %13, %97, %96 : vector<8x8xi1>, vector<8x8xf32>
    %cst_46 = arith.constant dense<0xFF800000> : vector<8xf32>
    %99 = vector.multi_reduction <maximumf>, %98, %cst_46 [1] : vector<8x8xf32> to vector<8xf32>
    %100 = vector.shape_cast %99 : vector<8xf32> to vector<8x1xf32>
    %101 = vector.broadcast %100 : vector<8x1xf32> to vector<8x8xf32>
    %102 = arith.subf %98, %101 : vector<8x8xf32>
    %103 = math.exp %102 : vector<8x8xf32>
    %cst_47 = arith.constant dense<0.000000e+00> : vector<8xf32>
    %104 = vector.multi_reduction <add>, %103, %cst_47 [1] : vector<8x8xf32> to vector<8xf32>
    %105 = vector.shape_cast %104 : vector<8xf32> to vector<8x1xf32>
    %106 = vector.broadcast %105 : vector<8x1xf32> to vector<8x8xf32>
    %107 = arith.divf %103, %106 : vector<8x8xf32>
    %108 = arith.mulf %107, %11 : vector<8x8xf32>
    %c1_i32_48 = arith.constant 1 : i32
    %109 = tpu.dynamic_rotate %108 by %c1_i32_48 dim 1 : vector<8x8xf32>, i32 -> vector<8x8xf32>
    %c1_i32_49 = arith.constant 1 : i32
    %110 = vector.broadcast %c1_i32_49 : i32 to vector<8x8xi32>
    %111 = arith.cmpi slt, %14, %110 : vector<8x8xi32>
    %cst_50 = arith.constant 0.000000e+00 : f32
    %112 = vector.broadcast %cst_50 : f32 to vector<8x8xf32>
    %113 = arith.select %111, %112, %109 : vector<8x8xi1>, vector<8x8xf32>
    %114 = arith.addf %108, %113 : vector<8x8xf32>
    %c2_i32_51 = arith.constant 2 : i32
    %115 = tpu.dynamic_rotate %114 by %c2_i32_51 dim 1 : vector<8x8xf32>, i32 -> vector<8x8xf32>
    %c2_i32_52 = arith.constant 2 : i32
    %116 = vector.broadcast %c2_i32_52 : i32 to vector<8x8xi32>
    %117 = arith.cmpi slt, %14, %116 : vector<8x8xi32>
    %cst_53 = arith.constant 0.000000e+00 : f32
    %118 = vector.broadcast %cst_53 : f32 to vector<8x8xf32>
    %119 = arith.select %117, %118, %115 : vector<8x8xi1>, vector<8x8xf32>
    %120 = arith.addf %114, %119 : vector<8x8xf32>
    %c4_i32_54 = arith.constant 4 : i32
    %121 = tpu.dynamic_rotate %120 by %c4_i32_54 dim 1 : vector<8x8xf32>, i32 -> vector<8x8xf32>
    %c4_i32_55 = arith.constant 4 : i32
    %122 = vector.broadcast %c4_i32_55 : i32 to vector<8x8xi32>
    %123 = arith.cmpi slt, %14, %122 : vector<8x8xi32>
    %cst_56 = arith.constant 0.000000e+00 : f32
    %124 = vector.broadcast %cst_56 : f32 to vector<8x8xf32>
    %125 = arith.select %123, %124, %121 : vector<8x8xi1>, vector<8x8xf32>
    %126 = arith.addf %120, %125 : vector<8x8xf32>
    %cst_57 = arith.constant dense<0.000000e+00> : vector<8xf32>
    %127 = vector.multi_reduction <add>, %108, %cst_57 [1] : vector<8x8xf32> to vector<8xf32>
    %128 = vector.shape_cast %127 : vector<8xf32> to vector<8x1xf32>
    %129 = vector.broadcast %128 : vector<8x1xf32> to vector<8x8xf32>
    %130 = arith.subf %129, %126 : vector<8x8xf32>
    %131 = arith.mulf %130, %20 : vector<8x8xf32>
    %cst_58 = arith.constant 0.000000e+00 : f32
    %132 = vector.broadcast %cst_58 : f32 to vector<8x8xf32>
    %133 = arith.maximumf %131, %132 : vector<8x8xf32>
    %134 = math.sqrt %133 : vector<8x8xf32>
    %c1 = arith.constant 1 : index
    %135 = memref.load %arg2[%c1] : memref<4xf32, #tpu.memory_space<smem>>
    %136 = vector.broadcast %135 : f32 to vector<8x8xf32>
    %137 = arith.mulf %134, %136 : vector<8x8xf32>
    %138 = math.exp %137 : vector<8x8xf32>
    %cst_59 = arith.constant 9.99999974E-6 : f32
    %139 = vector.broadcast %cst_59 : f32 to vector<8x8xf32>
    %140 = arith.maximumf %138, %139 : vector<8x8xf32>
    %141 = arith.mulf %96, %140 : vector<8x8xf32>
    %cst_60 = arith.constant -1.000000e+32 : f32
    %142 = vector.broadcast %cst_60 : f32 to vector<8x8xf32>
    %143 = arith.select %13, %142, %141 : vector<8x8xi1>, vector<8x8xf32>
    %cst_61 = arith.constant dense<0xFF800000> : vector<8xf32>
    %144 = vector.multi_reduction <maximumf>, %143, %cst_61 [1] : vector<8x8xf32> to vector<8xf32>
    %145 = vector.shape_cast %144 : vector<8xf32> to vector<8x1xf32>
    %146 = vector.broadcast %145 : vector<8x1xf32> to vector<8x8xf32>
    %147 = arith.subf %143, %146 : vector<8x8xf32>
    %148 = math.exp %147 : vector<8x8xf32>
    %cst_62 = arith.constant dense<0.000000e+00> : vector<8xf32>
    %149 = vector.multi_reduction <add>, %148, %cst_62 [1] : vector<8x8xf32> to vector<8xf32>
    %150 = vector.shape_cast %149 : vector<8xf32> to vector<8x1xf32>
    %151 = vector.broadcast %150 : vector<8x1xf32> to vector<8x8xf32>
    %152 = arith.divf %148, %151 : vector<8x8xf32>
    %cst_63 = arith.constant 0.000000e+00 : f32
    %153 = vector.broadcast %cst_63 : f32 to vector<8x8xf32>
    %154 = arith.select %22, %153, %152 : vector<8x8xi1>, vector<8x8xf32>
    %cst_64 = arith.constant dense<0.000000e+00> : vector<8x8xf32>
    %155 = tpu.matmul %154, %93, %cst_64 {dimension_numbers = #tpu.dot_dimension_numbers<[1], [0], [0], [1], [0, 0, 1, 1], [], []>} : vector<8x8xf32>, vector<8x8xf32>, vector<8x8xf32> -> vector<8x8xf32>
    %c8_65 = arith.constant 8 : index
    %c0_66 = arith.constant 0 : index
    %156 = vector.load %arg9[%c8_65, %c0_66] : memref<32x32xf32, #tpu.memory_space<vmem>>, vector<8x32xf32>
    %cst_67 = arith.constant dense<0.000000e+00> : vector<8x32xf32>
    %157 = tpu.matmul %155, %156, %cst_67 {dimension_numbers = #tpu.dot_dimension_numbers<[1], [0], [0], [1], [0, 0, 1, 1], [], []>} : vector<8x8xf32>, vector<8x32xf32>, vector<8x32xf32> -> vector<8x32xf32>
    %c0_68 = arith.constant 0 : index
    %c0_69 = arith.constant 0 : index
    %158 = vector.load %arg18[%c0_68, %c0_69] : memref<8x32xf32, #tpu.memory_space<vmem>>, vector<8x32xf32>
    %159 = arith.addf %158, %157 : vector<8x32xf32>
    %c0_70 = arith.constant 0 : index
    %c0_71 = arith.constant 0 : index
    %160 = vector.load %arg18[%c0_70, %c0_71] : memref<8x32xf32, #tpu.memory_space<vmem>>, vector<8x32xf32>
    tpu.vector_store %arg18[%c0_70, %c0_71], %159 {strides = array<i32>} : memref<8x32xf32, #tpu.memory_space<vmem>>, vector<8x32xf32>,
    %161 = vector.extract_strided_slice %10 {offsets = [0, 16], sizes = [8, 8], strides = [1, 1]} : vector<8x32xf32> to vector<8x8xf32>
    %c0_72 = arith.constant 0 : index
    %c16 = arith.constant 16 : index
    %162 = vector.load %arg16[%c0_72, %c16] : memref<8x32xf32, #tpu.memory_space<vmem>>, vector<8x8xf32>
    %c0_73 = arith.constant 0 : index
    %c16_74 = arith.constant 16 : index
    %163 = vector.load %arg17[%c0_73, %c16_74] : memref<8x32xf32, #tpu.memory_space<vmem>>, vector<8x8xf32>
    %cst_75 = arith.constant dense<0.000000e+00> : vector<8x8xf32>
    %164 = tpu.matmul %161, %162, %cst_75 {dimension_numbers = #tpu.dot_dimension_numbers<[1], [1], [0], [0], [0, 0, 1, 0], [], []>} : vector<8x8xf32>, vector<8x8xf32>, vector<8x8xf32> -> vector<8x8xf32>
    %cst_76 = arith.constant 0.353553385 : f32
    %165 = vector.broadcast %cst_76 : f32 to vector<8x8xf32>
    %166 = arith.mulf %164, %165 : vector<8x8xf32>
    %cst_77 = arith.constant -1.000000e+32 : f32
    %167 = vector.broadcast %cst_77 : f32 to vector<8x8xf32>
    %168 = arith.select %13, %167, %166 : vector<8x8xi1>, vector<8x8xf32>
    %cst_78 = arith.constant dense<0xFF800000> : vector<8xf32>
    %169 = vector.multi_reduction <maximumf>, %168, %cst_78 [1] : vector<8x8xf32> to vector<8xf32>
    %170 = vector.shape_cast %169 : vector<8xf32> to vector<8x1xf32>
    %171 = vector.broadcast %170 : vector<8x1xf32> to vector<8x8xf32>
    %172 = arith.subf %168, %171 : vector<8x8xf32>
    %173 = math.exp %172 : vector<8x8xf32>
    %cst_79 = arith.constant dense<0.000000e+00> : vector<8xf32>
    %174 = vector.multi_reduction <add>, %173, %cst_79 [1] : vector<8x8xf32> to vector<8xf32>
    %175 = vector.shape_cast %174 : vector<8xf32> to vector<8x1xf32>
    %176 = vector.broadcast %175 : vector<8x1xf32> to vector<8x8xf32>
    %177 = arith.divf %173, %176 : vector<8x8xf32>
    %178 = arith.mulf %177, %11 : vector<8x8xf32>
    %c1_i32_80 = arith.constant 1 : i32
    %179 = tpu.dynamic_rotate %178 by %c1_i32_80 dim 1 : vector<8x8xf32>, i32 -> vector<8x8xf32>
    %c1_i32_81 = arith.constant 1 : i32
    %180 = vector.broadcast %c1_i32_81 : i32 to vector<8x8xi32>
    %181 = arith.cmpi slt, %14, %180 : vector<8x8xi32>
    %cst_82 = arith.constant 0.000000e+00 : f32
    %182 = vector.broadcast %cst_82 : f32 to vector<8x8xf32>
    %183 = arith.select %181, %182, %179 : vector<8x8xi1>, vector<8x8xf32>
    %184 = arith.addf %178, %183 : vector<8x8xf32>
    %c2_i32_83 = arith.constant 2 : i32
    %185 = tpu.dynamic_rotate %184 by %c2_i32_83 dim 1 : vector<8x8xf32>, i32 -> vector<8x8xf32>
    %c2_i32_84 = arith.constant 2 : i32
    %186 = vector.broadcast %c2_i32_84 : i32 to vector<8x8xi32>
    %187 = arith.cmpi slt, %14, %186 : vector<8x8xi32>
    %cst_85 = arith.constant 0.000000e+00 : f32
    %188 = vector.broadcast %cst_85 : f32 to vector<8x8xf32>
    %189 = arith.select %187, %188, %185 : vector<8x8xi1>, vector<8x8xf32>
    %190 = arith.addf %184, %189 : vector<8x8xf32>
    %c4_i32_86 = arith.constant 4 : i32
    %191 = tpu.dynamic_rotate %190 by %c4_i32_86 dim 1 : vector<8x8xf32>, i32 -> vector<8x8xf32>
    %c4_i32_87 = arith.constant 4 : i32
    %192 = vector.broadcast %c4_i32_87 : i32 to vector<8x8xi32>
    %193 = arith.cmpi slt, %14, %192 : vector<8x8xi32>
    %cst_88 = arith.constant 0.000000e+00 : f32
    %194 = vector.broadcast %cst_88 : f32 to vector<8x8xf32>
    %195 = arith.select %193, %194, %191 : vector<8x8xi1>, vector<8x8xf32>
    %196 = arith.addf %190, %195 : vector<8x8xf32>
    %cst_89 = arith.constant dense<0.000000e+00> : vector<8xf32>
    %197 = vector.multi_reduction <add>, %178, %cst_89 [1] : vector<8x8xf32> to vector<8xf32>
    %198 = vector.shape_cast %197 : vector<8xf32> to vector<8x1xf32>
    %199 = vector.broadcast %198 : vector<8x1xf32> to vector<8x8xf32>
    %200 = arith.subf %199, %196 : vector<8x8xf32>
    %201 = arith.mulf %200, %20 : vector<8x8xf32>
    %cst_90 = arith.constant 0.000000e+00 : f32
    %202 = vector.broadcast %cst_90 : f32 to vector<8x8xf32>
    %203 = arith.maximumf %201, %202 : vector<8x8xf32>
    %204 = math.sqrt %203 : vector<8x8xf32>
    %c2 = arith.constant 2 : index
    %205 = memref.load %arg2[%c2] : memref<4xf32, #tpu.memory_space<smem>>
    %206 = vector.broadcast %205 : f32 to vector<8x8xf32>
    %207 = arith.mulf %204, %206 : vector<8x8xf32>
    %208 = math.exp %207 : vector<8x8xf32>
    %cst_91 = arith.constant 9.99999974E-6 : f32
    %209 = vector.broadcast %cst_91 : f32 to vector<8x8xf32>
    %210 = arith.maximumf %208, %209 : vector<8x8xf32>
    %211 = arith.mulf %166, %210 : vector<8x8xf32>
    %cst_92 = arith.constant -1.000000e+32 : f32
    %212 = vector.broadcast %cst_92 : f32 to vector<8x8xf32>
    %213 = arith.select %13, %212, %211 : vector<8x8xi1>, vector<8x8xf32>
    %cst_93 = arith.constant dense<0xFF800000> : vector<8xf32>
    %214 = vector.multi_reduction <maximumf>, %213, %cst_93 [1] : vector<8x8xf32> to vector<8xf32>
    %215 = vector.shape_cast %214 : vector<8xf32> to vector<8x1xf32>
    %216 = vector.broadcast %215 : vector<8x1xf32> to vector<8x8xf32>
    %217 = arith.subf %213, %216 : vector<8x8xf32>
    %218 = math.exp %217 : vector<8x8xf32>
    %cst_94 = arith.constant dense<0.000000e+00> : vector<8xf32>
    %219 = vector.multi_reduction <add>, %218, %cst_94 [1] : vector<8x8xf32> to vector<8xf32>
    %220 = vector.shape_cast %219 : vector<8xf32> to vector<8x1xf32>
    %221 = vector.broadcast %220 : vector<8x1xf32> to vector<8x8xf32>
    %222 = arith.divf %218, %221 : vector<8x8xf32>
    %cst_95 = arith.constant 0.000000e+00 : f32
    %223 = vector.broadcast %cst_95 : f32 to vector<8x8xf32>
    %224 = arith.select %22, %223, %222 : vector<8x8xi1>, vector<8x8xf32>
    %cst_96 = arith.constant dense<0.000000e+00> : vector<8x8xf32>
    %225 = tpu.matmul %224, %163, %cst_96 {dimension_numbers = #tpu.dot_dimension_numbers<[1], [0], [0], [1], [0, 0, 1, 1], [], []>} : vector<8x8xf32>, vector<8x8xf32>, vector<8x8xf32> -> vector<8x8xf32>
    %c16_97 = arith.constant 16 : index
    %c0_98 = arith.constant 0 : index
    %226 = vector.load %arg9[%c16_97, %c0_98] : memref<32x32xf32, #tpu.memory_space<vmem>>, vector<8x32xf32>
    %cst_99 = arith.constant dense<0.000000e+00> : vector<8x32xf32>
    %227 = tpu.matmul %225, %226, %cst_99 {dimension_numbers = #tpu.dot_dimension_numbers<[1], [0], [0], [1], [0, 0, 1, 1], [], []>} : vector<8x8xf32>, vector<8x32xf32>, vector<8x32xf32> -> vector<8x32xf32>
    %c0_100 = arith.constant 0 : index
    %c0_101 = arith.constant 0 : index
    %228 = vector.load %arg18[%c0_100, %c0_101] : memref<8x32xf32, #tpu.memory_space<vmem>>, vector<8x32xf32>
    %229 = arith.addf %228, %227 : vector<8x32xf32>
    %c0_102 = arith.constant 0 : index
    %c0_103 = arith.constant 0 : index
    %230 = vector.load %arg18[%c0_102, %c0_103] : memref<8x32xf32, #tpu.memory_space<vmem>>, vector<8x32xf32>
    tpu.vector_store %arg18[%c0_102, %c0_103], %229 {strides = array<i32>} : memref<8x32xf32, #tpu.memory_space<vmem>>, vector<8x32xf32>,
    %231 = vector.extract_strided_slice %10 {offsets = [0, 24], sizes = [8, 8], strides = [1, 1]} : vector<8x32xf32> to vector<8x8xf32>
    %c0_104 = arith.constant 0 : index
    %c24 = arith.constant 24 : index
    %232 = vector.load %arg16[%c0_104, %c24] : memref<8x32xf32, #tpu.memory_space<vmem>>, vector<8x8xf32>
    %c0_105 = arith.constant 0 : index
    %c24_106 = arith.constant 24 : index
    %233 = vector.load %arg17[%c0_105, %c24_106] : memref<8x32xf32, #tpu.memory_space<vmem>>, vector<8x8xf32>
    %cst_107 = arith.constant dense<0.000000e+00> : vector<8x8xf32>
    %234 = tpu.matmul %231, %232, %cst_107 {dimension_numbers = #tpu.dot_dimension_numbers<[1], [1], [0], [0], [0, 0, 1, 0], [], []>} : vector<8x8xf32>, vector<8x8xf32>, vector<8x8xf32> -> vector<8x8xf32>
    %cst_108 = arith.constant 0.353553385 : f32
    %235 = vector.broadcast %cst_108 : f32 to vector<8x8xf32>
    %236 = arith.mulf %234, %235 : vector<8x8xf32>
    %cst_109 = arith.constant -1.000000e+32 : f32
    %237 = vector.broadcast %cst_109 : f32 to vector<8x8xf32>
    %238 = arith.select %13, %237, %236 : vector<8x8xi1>, vector<8x8xf32>
    %cst_110 = arith.constant dense<0xFF800000> : vector<8xf32>
    %239 = vector.multi_reduction <maximumf>, %238, %cst_110 [1] : vector<8x8xf32> to vector<8xf32>
    %240 = vector.shape_cast %239 : vector<8xf32> to vector<8x1xf32>
    %241 = vector.broadcast %240 : vector<8x1xf32> to vector<8x8xf32>
    %242 = arith.subf %238, %241 : vector<8x8xf32>
    %243 = math.exp %242 : vector<8x8xf32>
    %cst_111 = arith.constant dense<0.000000e+00> : vector<8xf32>
    %244 = vector.multi_reduction <add>, %243, %cst_111 [1] : vector<8x8xf32> to vector<8xf32>
    %245 = vector.shape_cast %244 : vector<8xf32> to vector<8x1xf32>
    %246 = vector.broadcast %245 : vector<8x1xf32> to vector<8x8xf32>
    %247 = arith.divf %243, %246 : vector<8x8xf32>
    %248 = arith.mulf %247, %11 : vector<8x8xf32>
    %c1_i32_112 = arith.constant 1 : i32
    %249 = tpu.dynamic_rotate %248 by %c1_i32_112 dim 1 : vector<8x8xf32>, i32 -> vector<8x8xf32>
    %c1_i32_113 = arith.constant 1 : i32
    %250 = vector.broadcast %c1_i32_113 : i32 to vector<8x8xi32>
    %251 = arith.cmpi slt, %14, %250 : vector<8x8xi32>
    %cst_114 = arith.constant 0.000000e+00 : f32
    %252 = vector.broadcast %cst_114 : f32 to vector<8x8xf32>
    %253 = arith.select %251, %252, %249 : vector<8x8xi1>, vector<8x8xf32>
    %254 = arith.addf %248, %253 : vector<8x8xf32>
    %c2_i32_115 = arith.constant 2 : i32
    %255 = tpu.dynamic_rotate %254 by %c2_i32_115 dim 1 : vector<8x8xf32>, i32 -> vector<8x8xf32>
    %c2_i32_116 = arith.constant 2 : i32
    %256 = vector.broadcast %c2_i32_116 : i32 to vector<8x8xi32>
    %257 = arith.cmpi slt, %14, %256 : vector<8x8xi32>
    %cst_117 = arith.constant 0.000000e+00 : f32
    %258 = vector.broadcast %cst_117 : f32 to vector<8x8xf32>
    %259 = arith.select %257, %258, %255 : vector<8x8xi1>, vector<8x8xf32>
    %260 = arith.addf %254, %259 : vector<8x8xf32>
    %c4_i32_118 = arith.constant 4 : i32
    %261 = tpu.dynamic_rotate %260 by %c4_i32_118 dim 1 : vector<8x8xf32>, i32 -> vector<8x8xf32>
    %c4_i32_119 = arith.constant 4 : i32
    %262 = vector.broadcast %c4_i32_119 : i32 to vector<8x8xi32>
    %263 = arith.cmpi slt, %14, %262 : vector<8x8xi32>
    %cst_120 = arith.constant 0.000000e+00 : f32
    %264 = vector.broadcast %cst_120 : f32 to vector<8x8xf32>
    %265 = arith.select %263, %264, %261 : vector<8x8xi1>, vector<8x8xf32>
    %266 = arith.addf %260, %265 : vector<8x8xf32>
    %cst_121 = arith.constant dense<0.000000e+00> : vector<8xf32>
    %267 = vector.multi_reduction <add>, %248, %cst_121 [1] : vector<8x8xf32> to vector<8xf32>
    %268 = vector.shape_cast %267 : vector<8xf32> to vector<8x1xf32>
    %269 = vector.broadcast %268 : vector<8x1xf32> to vector<8x8xf32>
    %270 = arith.subf %269, %266 : vector<8x8xf32>
    %271 = arith.mulf %270, %20 : vector<8x8xf32>
    %cst_122 = arith.constant 0.000000e+00 : f32
    %272 = vector.broadcast %cst_122 : f32 to vector<8x8xf32>
    %273 = arith.maximumf %271, %272 : vector<8x8xf32>
    %274 = math.sqrt %273 : vector<8x8xf32>
    %c3 = arith.constant 3 : index
    %275 = memref.load %arg2[%c3] : memref<4xf32, #tpu.memory_space<smem>>
    %276 = vector.broadcast %275 : f32 to vector<8x8xf32>
    %277 = arith.mulf %274, %276 : vector<8x8xf32>
    %278 = math.exp %277 : vector<8x8xf32>
    %cst_123 = arith.constant 9.99999974E-6 : f32
    %279 = vector.broadcast %cst_123 : f32 to vector<8x8xf32>
    %280 = arith.maximumf %278, %279 : vector<8x8xf32>
    %281 = arith.mulf %236, %280 : vector<8x8xf32>
    %cst_124 = arith.constant -1.000000e+32 : f32
    %282 = vector.broadcast %cst_124 : f32 to vector<8x8xf32>
    %283 = arith.select %13, %282, %281 : vector<8x8xi1>, vector<8x8xf32>
    %cst_125 = arith.constant dense<0xFF800000> : vector<8xf32>
    %284 = vector.multi_reduction <maximumf>, %283, %cst_125 [1] : vector<8x8xf32> to vector<8xf32>
    %285 = vector.shape_cast %284 : vector<8xf32> to vector<8x1xf32>
    %286 = vector.broadcast %285 : vector<8x1xf32> to vector<8x8xf32>
    %287 = arith.subf %283, %286 : vector<8x8xf32>
    %288 = math.exp %287 : vector<8x8xf32>
    %cst_126 = arith.constant dense<0.000000e+00> : vector<8xf32>
    %289 = vector.multi_reduction <add>, %288, %cst_126 [1] : vector<8x8xf32> to vector<8xf32>
    %290 = vector.shape_cast %289 : vector<8xf32> to vector<8x1xf32>
    %291 = vector.broadcast %290 : vector<8x1xf32> to vector<8x8xf32>
    %292 = arith.divf %288, %291 : vector<8x8xf32>
    %cst_127 = arith.constant 0.000000e+00 : f32
    %293 = vector.broadcast %cst_127 : f32 to vector<8x8xf32>
    %294 = arith.select %22, %293, %292 : vector<8x8xi1>, vector<8x8xf32>
    %cst_128 = arith.constant dense<0.000000e+00> : vector<8x8xf32>
    %295 = tpu.matmul %294, %233, %cst_128 {dimension_numbers = #tpu.dot_dimension_numbers<[1], [0], [0], [1], [0, 0, 1, 1], [], []>} : vector<8x8xf32>, vector<8x8xf32>, vector<8x8xf32> -> vector<8x8xf32>
    %c24_129 = arith.constant 24 : index
    %c0_130 = arith.constant 0 : index
    %296 = vector.load %arg9[%c24_129, %c0_130] : memref<32x32xf32, #tpu.memory_space<vmem>>, vector<8x32xf32>
    %cst_131 = arith.constant dense<0.000000e+00> : vector<8x32xf32>
    %297 = tpu.matmul %295, %296, %cst_131 {dimension_numbers = #tpu.dot_dimension_numbers<[1], [0], [0], [1], [0, 0, 1, 1], [], []>} : vector<8x8xf32>, vector<8x32xf32>, vector<8x32xf32> -> vector<8x32xf32>
    %c0_132 = arith.constant 0 : index
    %c0_133 = arith.constant 0 : index
    %298 = vector.load %arg18[%c0_132, %c0_133] : memref<8x32xf32, #tpu.memory_space<vmem>>, vector<8x32xf32>
    %299 = arith.addf %298, %297 : vector<8x32xf32>
    %c0_134 = arith.constant 0 : index
    %c0_135 = arith.constant 0 : index
    %300 = vector.load %arg18[%c0_134, %c0_135] : memref<8x32xf32, #tpu.memory_space<vmem>>, vector<8x32xf32>
    tpu.vector_store %arg18[%c0_134, %c0_135], %299 {strides = array<i32>} : memref<8x32xf32, #tpu.memory_space<vmem>>, vector<8x32xf32>,
    %c0_136 = arith.constant 0 : index
    %c0_137 = arith.constant 0 : index
    %301 = vector.load %arg18[%c0_136, %c0_137] : memref<8x32xf32, #tpu.memory_space<vmem>>, vector<8x32xf32>
    %c0_138 = arith.constant 0 : index
    %c0_139 = arith.constant 0 : index
    %302 = vector.load %arg13[%c0_138, %c0_139] : memref<1x32xf32, #tpu.memory_space<vmem>>, vector<1x32xf32>
    %303 = vector.broadcast %302 : vector<1x32xf32> to vector<8x32xf32>
    %304 = arith.addf %301, %303 : vector<8x32xf32>
    %c0_140 = arith.constant 0 : index
    %c0_141 = arith.constant 0 : index
    %c0_142 = arith.constant 0 : index
    %305 = vector.load %arg15[%c0_140, %c0_141, %c0_142] : memref<1x8x32xf32, #tpu.memory_space<vmem>>, vector<1x8x32xf32>
    %306 = vector.shape_cast %305 : vector<1x8x32xf32> to vector<8x32xf32>
    %307 = vector.shape_cast %304 : vector<8x32xf32> to vector<1x8x32xf32>
    tpu.vector_store %arg15[%c0_140, %c0_141, %c0_142], %307 {strides = array<i32>} : memref<1x8x32xf32, #tpu.memory_space<vmem>>, vector<1x8x32xf32>,
    return
  }
  func.func @transform_0(%arg0: i32, %arg1: i32, %arg2: memref<4xf32, #tpu.memory_space<smem>>) -> (i32, i32, i32) {
    %c0_i32 = arith.constant 0 : i32
    %c0_i32_0 = arith.constant 0 : i32
    return %arg0, %arg1, %c0_i32 : i32, i32, i32
  }
  func.func @transform_1(%arg0: i32, %arg1: i32, %arg2: memref<4xf32, #tpu.memory_space<smem>>) -> (i32, i32, i32) {
    %c0_i32 = arith.constant 0 : i32
    %c0_i32_0 = arith.constant 0 : i32
    %c0_i32_1 = arith.constant 0 : i32
    return %arg0, %c0_i32, %c0_i32_0 : i32, i32, i32
  }
  func.func @transform_2(%arg0: i32, %arg1: i32, %arg2: memref<4xf32, #tpu.memory_space<smem>>) -> (i32, i32, i32) {
    %c0_i32 = arith.constant 0 : i32
    %c0_i32_0 = arith.constant 0 : i32
    %c0_i32_1 = arith.constant 0 : i32
    return %arg0, %c0_i32, %c0_i32_0 : i32, i32, i32
  }
  func.func @transform_3(%arg0: i32, %arg1: i32, %arg2: memref<4xf32, #tpu.memory_space<smem>>) -> (i32, i32) {
    %c0_i32 = arith.constant 0 : i32
    %c0_i32_0 = arith.constant 0 : i32
    %c0_i32_1 = arith.constant 0 : i32
    return %c0_i32, %c0_i32_0 : i32, i32
  }
  func.func @transform_4(%arg0: i32, %arg1: i32, %arg2: memref<4xf32, #tpu.memory_space<smem>>) -> (i32, i32) {
    %c0_i32 = arith.constant 0 : i32
    %c0_i32_0 = arith.constant 0 : i32
    %c0_i32_1 = arith.constant 0 : i32
    return %c0_i32, %c0_i32_0 : i32, i32
  }
  func.func @transform_5(%arg0: i32, %arg1: i32, %arg2: memref<4xf32, #tpu.memory_space<smem>>) -> (i32, i32) {
    %c0_i32 = arith.constant 0 : i32
    %c0_i32_0 = arith.constant 0 : i32
    %c0_i32_1 = arith.constant 0 : i32
    return %c0_i32, %c0_i32_0 : i32, i32
  }
  func.func @transform_6(%arg0: i32, %arg1: i32, %arg2: memref<4xf32, #tpu.memory_space<smem>>) -> (i32, i32) {
    %c0_i32 = arith.constant 0 : i32
    %c0_i32_0 = arith.constant 0 : i32
    %c0_i32_1 = arith.constant 0 : i32
    return %c0_i32, %c0_i32_0 : i32, i32
  }
  func.func @transform_7(%arg0: i32, %arg1: i32, %arg2: memref<4xf32, #tpu.memory_space<smem>>) -> (i32, i32) {
    %c0_i32 = arith.constant 0 : i32
    %c0_i32_0 = arith.constant 0 : i32
    %c0_i32_1 = arith.constant 0 : i32
    return %c0_i32, %c0_i32_0 : i32, i32
  }
  func.func @transform_8(%arg0: i32, %arg1: i32, %arg2: memref<4xf32, #tpu.memory_space<smem>>) -> (i32, i32) {
    %c0_i32 = arith.constant 0 : i32
    %c0_i32_0 = arith.constant 0 : i32
    %c0_i32_1 = arith.constant 0 : i32
    return %c0_i32, %c0_i32_0 : i32, i32
  }
  func.func @transform_9(%arg0: i32, %arg1: i32, %arg2: memref<4xf32, #tpu.memory_space<smem>>) -> (i32, i32) {
    %c0_i32 = arith.constant 0 : i32
    %c0_i32_0 = arith.constant 0 : i32
    %c0_i32_1 = arith.constant 0 : i32
    return %c0_i32, %c0_i32_0 : i32, i32
  }
  func.func @transform_10(%arg0: i32, %arg1: i32, %arg2: memref<4xf32, #tpu.memory_space<smem>>) -> (i32, i32) {
    %c0_i32 = arith.constant 0 : i32
    %c0_i32_0 = arith.constant 0 : i32
    %c0_i32_1 = arith.constant 0 : i32
    return %c0_i32, %c0_i32_0 : i32, i32
  }
  func.func @transform_11(%arg0: i32, %arg1: i32, %arg2: memref<4xf32, #tpu.memory_space<smem>>) -> (i32, i32) {
    %c0_i32 = arith.constant 0 : i32
    %c0_i32_0 = arith.constant 0 : i32
    return %arg1, %c0_i32 : i32, i32
  }
  func.func @transform_12(%arg0: i32, %arg1: i32, %arg2: memref<4xf32, #tpu.memory_space<smem>>) -> (i32, i32, i32) {
    %c0_i32 = arith.constant 0 : i32
    %c0_i32_0 = arith.constant 0 : i32
    return %arg0, %arg1, %c0_i32 : i32, i32, i32
  }
}

</mosaic_0001>

<llo_original>
// kernel: tpu_custom_call.1
$region0: #{tpu_custom_call.1}
  #allocation0 [shape = 'u32[]', space=smem, size = 0x4, offset = 0x4, fixed_abs, tag = 'smem constant byte address 0x4 - core index']
  #allocation1 [shape = 'u32[144,128]{1,0:T(1,128)}', space=vmem, size = 0x12000, scoped, tag = 'internal scratch']
  #allocation2 [shape = 'f32[8,32]{1,0:T(8,128)}', space=vmem, size = 0x1000, scoped, tag = 'scratch operand']
  #allocation3 [shape = 'f32[8,32]{1,0:T(8,128)}', space=vmem, size = 0x1000, scoped, tag = 'scratch operand']
  #allocation4 [shape = 'f32[8,32]{1,0:T(8,128)}', space=vmem, size = 0x1000, scoped, tag = 'scratch operand']
  #allocation5 [shape = 's32[1]{0}', space=sflag, size = 0x4, scoped, tag = 'scoped memory for tpu_custom_call.1']
  #allocation6 [shape = 'u8[512]{0}', space=smem, size = 0x200, scoped, tag = 'prefetched SMEM operand 0']
  %s0 = inlined_call_operand.hbm [shape: f32[4], index: 0, kind: input, shape index: {}]
  %s1 = inlined_call_operand.hbm [shape: f32[2,8,32], index: 1, kind: input, shape index: {}]
  %s2 = inlined_call_operand.hbm [shape: f32[2,8,32], index: 2, kind: input, shape index: {}]
  %s3 = inlined_call_operand.hbm [shape: f32[2,8,32], index: 3, kind: input, shape index: {}]
  %s4 = inlined_call_operand.hbm [shape: f32[32,32], index: 4, kind: input, shape index: {}]
  %s5 = inlined_call_operand.hbm [shape: f32[32,32], index: 5, kind: input, shape index: {}]
  %s6 = inlined_call_operand.hbm [shape: f32[32,32], index: 6, kind: input, shape index: {}]
  %s7 = inlined_call_operand.hbm [shape: f32[32,32], index: 7, kind: input, shape index: {}]
  %s8 = inlined_call_operand.vmem [shape: f32[1,32], index: 8, kind: input, shape index: {}]
  %s9 = inlined_call_operand.vmem [shape: f32[1,32], index: 9, kind: input, shape index: {}]
  %s10 = inlined_call_operand.vmem [shape: f32[1,32], index: 10, kind: input, shape index: {}]
  %s11 = inlined_call_operand.vmem [shape: f32[1,32], index: 11, kind: input, shape index: {}]
  %s12 = inlined_call_operand.vmem [shape: f32[8,8], index: 12, kind: input, shape index: {}]
  %s13 = inlined_call_operand.hbm [shape: f32[2,8,32], index: 13, kind: output, shape index: {}]
  %s14 = sld [smem:[#allocation0]]
  $region113: #{tpu_custom_call.1} parent=0
    _
  %s16 = ssub.s32 1, %s14
  %s17 = scalar_select 0, %s16, %s14
  %19 = dma.hbm_to_smem %s0, 16, [#allocation6], [#allocation5]
  %20 = dma.done [#allocation5], 16
  %21 = sfence
  $region1: #{tpu_custom_call.1} parent=0
    #allocation7 [shape = 'u8[8192]{0}', space=vmem, size = 0x2000, scoped, tag = 'input window, operand 1']
    #allocation8 [shape = 's32[2]{0}', space=sflag, size = 0x8, scoped, tag = 'scoped memory for tpu_custom_call.1']
    #allocation9 [shape = 's32[2]{0}', space=sflag, size = 0x8, scoped, tag = 'scoped memory for tpu_custom_call.1']
    #allocation10 [shape = 'u8[8192]{0}', space=vmem, size = 0x2000, scoped, tag = 'input window, operand 2']
    #allocation11 [shape = 's32[2]{0}', space=sflag, size = 0x8, scoped, tag = 'scoped memory for tpu_custom_call.1']
    #allocation12 [shape = 'u8[8192]{0}', space=vmem, size = 0x2000, scoped, tag = 'input window, operand 3']
    #allocation13 [shape = 'u8[16384]{0}', space=vmem, size = 0x4000, scoped, tag = 'input window, operand 4, single buffered']
    #allocation14 [shape = 's32[1]{0}', space=sflag, size = 0x4, scoped, tag = 'scoped memory for tpu_custom_call.1']
    #allocation15 [shape = 'u8[16384]{0}', space=vmem, size = 0x4000, scoped, tag = 'input window, operand 5, single buffered']
    #allocation16 [shape = 'u8[16384]{0}', space=vmem, size = 0x4000, scoped, tag = 'input window, operand 6, single buffered']
    #allocation17 [shape = 's32[1]{0}', space=sflag, size = 0x4, scoped, tag = 'scoped memory for tpu_custom_call.1']
    #allocation18 [shape = 'u8[16384]{0}', space=vmem, size = 0x4000, scoped, tag = 'input window, operand 7, single buffered']
    #allocation19 [shape = 'u8[8192]{0}', space=vmem, size = 0x2000, scoped, tag = 'output window, operand 0']
    %22 = vsyncpa [#allocation8], 0
    %s23 = scalar_lea.sflag [#allocation8], 1
    %24 = vsyncpa %s23, 0
    %25 = vsyncpa [#allocation11], 0
    %s26 = scalar_lea.sflag [#allocation11], 1
    %27 = vsyncpa %s26, 0
    %28 = vsyncpa [#allocation14], 0
    %29 = vsyncpa [#allocation17], 0
    %30 = vsyncpa [#allocation9], 0
    %s31 = scalar_lea.sflag [#allocation9], 1
    %32 = vsyncpa %s31, 0
    loop: start=0, step=1, limit=4
    $region2: #{tpu_custom_call.1} parent=1 // loop_pre_header
      _
    $region3: #{tpu_custom_call.1} parent=1 // loop_header
      %s34 = sphi 0, %s38
      %p35 = scmp.ge.s32.totalorder %s34, 4
      %s41 = sphi 0, %s53
      %s42 = sphi 0, %s49
      %s43 = sphi 0, %s41
      %s44 = sphi 0, %s42
      %s45 = sphi 0, %s43
      %s46 = sphi 0, %s44
      %s58 = sphi 0, %s60
      %s61 = sphi 0, %s58
      %s62 = sphi 0, %s61
      %s78 = sphi 0, %s62
      %s84 = sphi 0, %s86
      %s87 = sphi 0, %s84
      %s88 = sphi 0, %s87
      %s104 = sphi 0, %s88
      %s110 = sphi 0, %s112
      %s113 = sphi 0, %s110
      %s114 = sphi 0, %s113
      %s130 = sphi 0, %s114
      %s134 = sphi 0, %s134
      %s136 = sphi 0, %s134
      %s137 = sphi 0, %s136
      %s151 = sphi 0, %s137
      %s155 = sphi 0, %s155
      %s157 = sphi 0, %s155
      %s158 = sphi 0, %s157
      %s172 = sphi 0, %s158
      %s176 = sphi 0, %s176
      %s178 = sphi 0, %s176
      %s179 = sphi 0, %s178
      %s193 = sphi 0, %s179
      %s197 = sphi 0, %s197
      %s199 = sphi 0, %s197
      %s200 = sphi 0, %s199
      %s214 = sphi 0, %s200
      %s218 = sphi 0, %s218
      %s220 = sphi 0, %s218
      %s221 = sphi 0, %s220
      %s235 = sphi 0, %s221
      %s239 = sphi 0, %s239
      %s241 = sphi 0, %s239
      %s242 = sphi 0, %s241
      %s256 = sphi 0, %s242
      %s260 = sphi 0, %s260
      %s262 = sphi 0, %s260
      %s263 = sphi 0, %s262
      %s277 = sphi 0, %s263
      %s281 = sphi 0, %s281
      %s283 = sphi 0, %s281
      %s284 = sphi 0, %s283
      %s298 = sphi 0, %s284
      %s304 = sphi 0, %s306
      %s307 = sphi 0, %s304
      %s308 = sphi 0, %s307
      %s324 = sphi 0, %s308
      %s332 = sphi 0, %s334
      %s335 = sphi 0, %s332
      %s336 = sphi 0, %s335
      %s352 = sphi 0, %s336
    $region4: #{tpu_custom_call.1} parent=1 // loop_header_branch
      %37 = sbr.rel (%p35) target = $region8
    $region5: #{tpu_custom_call.1} parent=1 // loop_body
      %s39 = ssub.s32 %s34, 1
      %s40 = ssub.s32 %s34, 2
      %s47 = sadd.s32 1, %s42
      %p48 = scmp.ge.s32.totalorder %s47, 1
      %s49 = scalar_select %p48, 0, %s47
      %s50 = sadd.s32 1, %s41
      %s51 = scalar_select %p48, %s50, %s41
      %p52 = scmp.ge.s32.totalorder %s51, 2
      %s53 = scalar_select %p52, 0, %s51
      %s54 = ssub.s32 %s41, %s53
      %s55 = ssub.s32 %s42, %s49
      %s56 = sor.u32 %s54, %s55
      %p57 = scmp.eq.s32.totalorder %s56, 0
      %s59 = sadd.s32 %s58, 1
      %s60 = scalar_select %p57, %s58, %s59
      %p63 = pneg %p57
      %p64 = scmp.eq.s32.totalorder %s34, 1
      %p65 = por %p63, %p64
      %p66 = scmp.ne.s32.totalorder %s58, %s61
      %p67 = scmp.eq.s32.totalorder %s34, 0
      %p68 = por %p66, %p67
      %p69 = scmp.ne.s32.totalorder %s58, %s61
      %p70 = scmp.eq.s32.totalorder %s39, 1
      %p71 = por %p69, %p70
      %p72 = scmp.ne.s32.totalorder %s61, %s62
      %p73 = scmp.eq.s32.totalorder %s39, 0
      %p74 = por %p72, %p73
      %p75 = scmp.ne.s32.totalorder %s61, %s62
      %p76 = scmp.eq.s32.totalorder %s40, 1
      %p77 = por %p75, %p76
      %p79 = scmp.ne.s32.totalorder %s62, %s78
      %p80 = scmp.eq.s32.totalorder %s40, 0
      %p81 = por %p79, %p80
      %s82 = ssub.s32 %s41, %s53
      %p83 = scmp.eq.s32.totalorder %s82, 0
      %s85 = sadd.s32 %s84, 1
      %s86 = scalar_select %p83, %s84, %s85
      %p89 = pneg %p83
      %p90 = scmp.eq.s32.totalorder %s34, 1
      %p91 = por %p89, %p90
      %p92 = scmp.ne.s32.totalorder %s84, %s87
      %p93 = scmp.eq.s32.totalorder %s34, 0
      %p94 = por %p92, %p93
      %p95 = scmp.ne.s32.totalorder %s84, %s87
      %p96 = scmp.eq.s32.totalorder %s39, 1
      %p97 = por %p95, %p96
      %p98 = scmp.ne.s32.totalorder %s87, %s88
      %p99 = scmp.eq.s32.totalorder %s39, 0
      %p100 = por %p98, %p99
      %p101 = scmp.ne.s32.totalorder %s87, %s88
      %p102 = scmp.eq.s32.totalorder %s40, 1
      %p103 = por %p101, %p102
      %p105 = scmp.ne.s32.totalorder %s88, %s104
      %p106 = scmp.eq.s32.totalorder %s40, 0
      %p107 = por %p105, %p106
      %s108 = ssub.s32 %s41, %s53
      %p109 = scmp.eq.s32.totalorder %s108, 0
      %s111 = sadd.s32 %s110, 1
      %s112 = scalar_select %p109, %s110, %s111
      %p115 = pneg %p109
      %p116 = scmp.eq.s32.totalorder %s34, 1
      %p117 = por %p115, %p116
      %p118 = scmp.ne.s32.totalorder %s110, %s113
      %p119 = scmp.eq.s32.totalorder %s34, 0
      %p120 = por %p118, %p119
      %p121 = scmp.ne.s32.totalorder %s110, %s113
      %p122 = scmp.eq.s32.totalorder %s39, 1
      %p123 = por %p121, %p122
      %p124 = scmp.ne.s32.totalorder %s113, %s114
      %p125 = scmp.eq.s32.totalorder %s39, 0
      %p126 = por %p124, %p125
      %p127 = scmp.ne.s32.totalorder %s113, %s114
      %p128 = scmp.eq.s32.totalorder %s40, 1
      %p129 = por %p127, %p128
      %p131 = scmp.ne.s32.totalorder %s114, %s130
      %p132 = scmp.eq.s32.totalorder %s40, 0
      %p133 = por %p131, %p132
      %s135 = sadd.s32 %s134, 1
      %p138 = scmp.eq.s32.totalorder %s34, 1
      %p139 = scmp.ne.s32.totalorder %s134, %s136
      %p140 = scmp.eq.s32.totalorder %s34, 0
      %p141 = por %p139, %p140
      %p142 = scmp.ne.s32.totalorder %s134, %s136
      %p143 = scmp.eq.s32.totalorder %s39, 1
      %p144 = por %p142, %p143
      %p145 = scmp.ne.s32.totalorder %s136, %s137
      %p146 = scmp.eq.s32.totalorder %s39, 0
      %p147 = por %p145, %p146
      %p148 = scmp.ne.s32.totalorder %s136, %s137
      %p149 = scmp.eq.s32.totalorder %s40, 1
      %p150 = por %p148, %p149
      %p152 = scmp.ne.s32.totalorder %s137, %s151
      %p153 = scmp.eq.s32.totalorder %s40, 0
      %p154 = por %p152, %p153
      %s156 = sadd.s32 %s155, 1
      %p159 = scmp.eq.s32.totalorder %s34, 1
      %p160 = scmp.ne.s32.totalorder %s155, %s157
      %p161 = scmp.eq.s32.totalorder %s34, 0
      %p162 = por %p160, %p161
      %p163 = scmp.ne.s32.totalorder %s155, %s157
      %p164 = scmp.eq.s32.totalorder %s39, 1
      %p165 = por %p163, %p164
      %p166 = scmp.ne.s32.totalorder %s157, %s158
      %p167 = scmp.eq.s32.totalorder %s39, 0
      %p168 = por %p166, %p167
      %p169 = scmp.ne.s32.totalorder %s157, %s158
      %p170 = scmp.eq.s32.totalorder %s40, 1
      %p171 = por %p169, %p170
      %p173 = scmp.ne.s32.totalorder %s158, %s172
      %p174 = scmp.eq.s32.totalorder %s40, 0
      %p175 = por %p173, %p174
      %s177 = sadd.s32 %s176, 1
      %p180 = scmp.eq.s32.totalorder %s34, 1
      %p181 = scmp.ne.s32.totalorder %s176, %s178
      %p182 = scmp.eq.s32.totalorder %s34, 0
      %p183 = por %p181, %p182
      %p184 = scmp.ne.s32.totalorder %s176, %s178
      %p185 = scmp.eq.s32.totalorder %s39, 1
      %p186 = por %p184, %p185
      %p187 = scmp.ne.s32.totalorder %s178, %s179
      %p188 = scmp.eq.s32.totalorder %s39, 0
      %p189 = por %p187, %p188
      %p190 = scmp.ne.s32.totalorder %s178, %s179
      %p191 = scmp.eq.s32.totalorder %s40, 1
      %p192 = por %p190, %p191
      %p194 = scmp.ne.s32.totalorder %s179, %s193
      %p195 = scmp.eq.s32.totalorder %s40, 0
      %p196 = por %p194, %p195
      %s198 = sadd.s32 %s197, 1
      %p201 = scmp.eq.s32.totalorder %s34, 1
      %p202 = scmp.ne.s32.totalorder %s197, %s199
      %p203 = scmp.eq.s32.totalorder %s34, 0
      %p204 = por %p202, %p203
      %p205 = scmp.ne.s32.totalorder %s197, %s199
      %p206 = scmp.eq.s32.totalorder %s39, 1
      %p207 = por %p205, %p206
      %p208 = scmp.ne.s32.totalorder %s199, %s200
      %p209 = scmp.eq.s32.totalorder %s39, 0
      %p210 = por %p208, %p209
      %p211 = scmp.ne.s32.totalorder %s199, %s200
      %p212 = scmp.eq.s32.totalorder %s40, 1
      %p213 = por %p211, %p212
      %p215 = scmp.ne.s32.totalorder %s200, %s214
      %p216 = scmp.eq.s32.totalorder %s40, 0
      %p217 = por %p215, %p216
      %s219 = sadd.s32 %s218, 1
      %p222 = scmp.eq.s32.totalorder %s34, 1
      %p223 = scmp.ne.s32.totalorder %s218, %s220
      %p224 = scmp.eq.s32.totalorder %s34, 0
      %p225 = por %p223, %p224
      %p226 = scmp.ne.s32.totalorder %s218, %s220
      %p227 = scmp.eq.s32.totalorder %s39, 1
      %p228 = por %p226, %p227
      %p229 = scmp.ne.s32.totalorder %s220, %s221
      %p230 = scmp.eq.s32.totalorder %s39, 0
      %p231 = por %p229, %p230
      %p232 = scmp.ne.s32.totalorder %s220, %s221
      %p233 = scmp.eq.s32.totalorder %s40, 1
      %p234 = por %p232, %p233
      %p236 = scmp.ne.s32.totalorder %s221, %s235
      %p237 = scmp.eq.s32.totalorder %s40, 0
      %p238 = por %p236, %p237
      %s240 = sadd.s32 %s239, 1
      %p243 = scmp.eq.s32.totalorder %s34, 1
      %p244 = scmp.ne.s32.totalorder %s239, %s241
      %p245 = scmp.eq.s32.totalorder %s34, 0
      %p246 = por %p244, %p245
      %p247 = scmp.ne.s32.totalorder %s239, %s241
      %p248 = scmp.eq.s32.totalorder %s39, 1
      %p249 = por %p247, %p248
      %p250 = scmp.ne.s32.totalorder %s241, %s242
      %p251 = scmp.eq.s32.totalorder %s39, 0
      %p252 = por %p250, %p251
      %p253 = scmp.ne.s32.totalorder %s241, %s242
      %p254 = scmp.eq.s32.totalorder %s40, 1
      %p255 = por %p253, %p254
      %p257 = scmp.ne.s32.totalorder %s242, %s256
      %p258 = scmp.eq.s32.totalorder %s40, 0
      %p259 = por %p257, %p258
      %s261 = sadd.s32 %s260, 1
      %p264 = scmp.eq.s32.totalorder %s34, 1
      %p265 = scmp.ne.s32.totalorder %s260, %s262
      %p266 = scmp.eq.s32.totalorder %s34, 0
      %p267 = por %p265, %p266
      %p268 = scmp.ne.s32.totalorder %s260, %s262
      %p269 = scmp.eq.s32.totalorder %s39, 1
      %p270 = por %p268, %p269
      %p271 = scmp.ne.s32.totalorder %s262, %s263
      %p272 = scmp.eq.s32.totalorder %s39, 0
      %p273 = por %p271, %p272
      %p274 = scmp.ne.s32.totalorder %s262, %s263
      %p275 = scmp.eq.s32.totalorder %s40, 1
      %p276 = por %p274, %p275
      %p278 = scmp.ne.s32.totalorder %s263, %s277
      %p279 = scmp.eq.s32.totalorder %s40, 0
      %p280 = por %p278, %p279
      %s282 = sadd.s32 %s281, 1
      %p285 = scmp.eq.s32.totalorder %s34, 1
      %p286 = scmp.ne.s32.totalorder %s281, %s283
      %p287 = scmp.eq.s32.totalorder %s34, 0
      %p288 = por %p286, %p287
      %p289 = scmp.ne.s32.totalorder %s281, %s283
      %p290 = scmp.eq.s32.totalorder %s39, 1
      %p291 = por %p289, %p290
      %p292 = scmp.ne.s32.totalorder %s283, %s284
      %p293 = scmp.eq.s32.totalorder %s39, 0
      %p294 = por %p292, %p293
      %p295 = scmp.ne.s32.totalorder %s283, %s284
      %p296 = scmp.eq.s32.totalorder %s40, 1
      %p297 = por %p295, %p296
      %p299 = scmp.ne.s32.totalorder %s284, %s298
      %p300 = scmp.eq.s32.totalorder %s40, 0
      %p301 = por %p299, %p300
      %s302 = ssub.s32 %s42, %s49
      %p303 = scmp.eq.s32.totalorder %s302, 0
      %s305 = sadd.s32 %s304, 1
      %s306 = scalar_select %p303, %s304, %s305
      %p309 = pneg %p303
      %p310 = scmp.eq.s32.totalorder %s34, 1
      %p311 = por %p309, %p310
      %p312 = scmp.ne.s32.totalorder %s304, %s307
      %p313 = scmp.eq.s32.totalorder %s34, 0
      %p314 = por %p312, %p313
      %p315 = scmp.ne.s32.totalorder %s304, %s307
      %p316 = scmp.eq.s32.totalorder %s39, 1
      %p317 = por %p315, %p316
      %p318 = scmp.ne.s32.totalorder %s307, %s308
      %p319 = scmp.eq.s32.totalorder %s39, 0
      %p320 = por %p318, %p319
      %p321 = scmp.ne.s32.totalorder %s307, %s308
      %p322 = scmp.eq.s32.totalorder %s40, 1
      %p323 = por %p321, %p322
      %p325 = scmp.ne.s32.totalorder %s308, %s324
      %p326 = scmp.eq.s32.totalorder %s40, 0
      %p327 = por %p325, %p326
      %s328 = ssub.s32 %s41, %s53
      %s329 = ssub.s32 %s42, %s49
      %s330 = sor.u32 %s328, %s329
      %p331 = scmp.eq.s32.totalorder %s330, 0
      %s333 = sadd.s32 %s332, 1
      %s334 = scalar_select %p331, %s332, %s333
      %p337 = pneg %p331
      %p338 = scmp.eq.s32.totalorder %s34, 1
      %p339 = por %p337, %p338
      %p340 = scmp.ne.s32.totalorder %s332, %s335
      %p341 = scmp.eq.s32.totalorder %s34, 0
      %p342 = por %p340, %p341
      %p343 = scmp.ne.s32.totalorder %s332, %s335
      %p344 = scmp.eq.s32.totalorder %s39, 1
      %p345 = por %p343, %p344
      %p346 = scmp.ne.s32.totalorder %s335, %s336
      %p347 = scmp.eq.s32.totalorder %s39, 0
      %p348 = por %p346, %p347
      %p349 = scmp.ne.s32.totalorder %s335, %s336
      %p350 = scmp.eq.s32.totalorder %s40, 1
      %p351 = por %p349, %p350
      %p353 = scmp.ne.s32.totalorder %s336, %s352
      %p354 = scmp.eq.s32.totalorder %s40, 0
      %p355 = por %p353, %p354
      %p356 = scmp.le.s32.totalorder 1, %s34
      %p357 = scmp.lt.s32.totalorder %s34, 3
      %p358 = pnand %p356, %p357
      %p359 = pneg %p358
      // Predicated region
      $region9: #{tpu_custom_call.1} parent=5 // pred_check
        _
      $region10: #{tpu_custom_call.1} parent=5 // pred_check_branch
        %361 = sbr.rel (%p358) target = $region12
      $region11: #{tpu_custom_call.1} parent=5 // pred_region
        %s362 = ssub.s32 %s34, 1
        // Predicated region
        $region13: #{tpu_custom_call.1} parent=11 // pred_check
          %p363 = pneg %p147
        $region14: #{tpu_custom_call.1} parent=11 // pred_check_branch
          %365 = sbr.rel (%p363) target = $region16
        $region15: #{tpu_custom_call.1} parent=11 // pred_region
          %s367 = ssub.s32 512, 512
          %368 = vsyncadd [#allocation14], %s367
          %s369 = sshll.u32 [#allocation13], 4
          %s370 = int_to_ptr.vmem [resolvable:$true] %s369
          %375 = dma.hbm_to_vmem [thread:$0]  %s4, 512, %s370, [#allocation14], 128, 128, 8
        $region16: #{tpu_custom_call.1} parent=11 // pred_fallthru
          _
        // Predicated region
        $region17: #{tpu_custom_call.1} parent=11 // pred_check
          %p376 = pneg %p168
        $region18: #{tpu_custom_call.1} parent=11 // pred_check_branch
          %378 = sbr.rel (%p376) target = $region20
        $region19: #{tpu_custom_call.1} parent=11 // pred_region
          %s380 = ssub.s32 512, 512
          %381 = vsyncadd [#allocation14], %s380
          %s382 = sshll.u32 [#allocation15], 4
          %s383 = int_to_ptr.vmem [resolvable:$true] %s382
          %388 = dma.hbm_to_vmem [thread:$0]  %s5, 512, %s383, [#allocation14], 128, 128, 8
        $region20: #{tpu_custom_call.1} parent=11 // pred_fallthru
          _
        // Predicated region
        $region21: #{tpu_custom_call.1} parent=11 // pred_check
          %p389 = pneg %p189
        $region22: #{tpu_custom_call.1} parent=11 // pred_check_branch
          %391 = sbr.rel (%p389) target = $region24
        $region23: #{tpu_custom_call.1} parent=11 // pred_region
          %s393 = ssub.s32 512, 512
          %394 = vsyncadd [#allocation17], %s393
          %s395 = sshll.u32 [#allocation16], 4
          %s396 = int_to_ptr.vmem [resolvable:$true] %s395
          %401 = dma.hbm_to_vmem [thread:$0]  %s6, 512, %s396, [#allocation17], 128, 128, 8
        $region24: #{tpu_custom_call.1} parent=11 // pred_fallthru
          _
        // Predicated region
        $region25: #{tpu_custom_call.1} parent=11 // pred_check
          %p402 = pneg %p210
        $region26: #{tpu_custom_call.1} parent=11 // pred_check_branch
          %404 = sbr.rel (%p402) target = $region28
        $region27: #{tpu_custom_call.1} parent=11 // pred_region
          %s406 = ssub.s32 512, 512
          %407 = vsyncadd [#allocation17], %s406
          %s408 = sshll.u32 [#allocation18], 4
          %s409 = int_to_ptr.vmem [resolvable:$true] %s408
          %414 = dma.hbm_to_vmem [thread:$0]  %s7, 512, %s409, [#allocation17], 128, 128, 8
        $region28: #{tpu_custom_call.1} parent=11 // pred_fallthru
          _
        // Predicated region
        $region29: #{tpu_custom_call.1} parent=11 // pred_check
          %p415 = pneg %p231
        $region30: #{tpu_custom_call.1} parent=11 // pred_check_branch
          %417 = sbr.rel (%p415) target = $region32
        $region31: #{tpu_custom_call.1} parent=11 // pred_region
          _
        $region32: #{tpu_custom_call.1} parent=11 // pred_fallthru
          _
        // Predicated region
        $region33: #{tpu_custom_call.1} parent=11 // pred_check
          %p418 = pneg %p252
        $region34: #{tpu_custom_call.1} parent=11 // pred_check_branch
          %420 = sbr.rel (%p418) target = $region36
        $region35: #{tpu_custom_call.1} parent=11 // pred_region
          _
        $region36: #{tpu_custom_call.1} parent=11 // pred_fallthru
          _
        // Predicated region
        $region37: #{tpu_custom_call.1} parent=11 // pred_check
          %p421 = pneg %p273
        $region38: #{tpu_custom_call.1} parent=11 // pred_check_branch
          %423 = sbr.rel (%p421) target = $region40
        $region39: #{tpu_custom_call.1} parent=11 // pred_region
          _
        $region40: #{tpu_custom_call.1} parent=11 // pred_fallthru
          _
        // Predicated region
        $region41: #{tpu_custom_call.1} parent=11 // pred_check
          %p424 = pneg %p294
        $region42: #{tpu_custom_call.1} parent=11 // pred_check_branch
          %426 = sbr.rel (%p424) target = $region44
        $region43: #{tpu_custom_call.1} parent=11 // pred_region
          _
        $region44: #{tpu_custom_call.1} parent=11 // pred_fallthru
          _
        // Predicated region
        $region45: #{tpu_custom_call.1} parent=11 // pred_check
          %p427 = pneg %p320
        $region46: #{tpu_custom_call.1} parent=11 // pred_check_branch
          %429 = sbr.rel (%p427) target = $region48
        $region47: #{tpu_custom_call.1} parent=11 // pred_region
          %p430 = scmp.lt.s32.totalorder %s44, 0
          %s431 = scalar_select %p430, %s44, 0
          %s432 = smul.addr %s431, 8
          %s433 = scalar_lea.vmem %s12, %s432
        $region48: #{tpu_custom_call.1} parent=11 // pred_fallthru
          _
      $region12: #{tpu_custom_call.1} parent=5 // pred_fallthru
        _
      %p434 = scmp.lt.s32.totalorder %s34, 2
      // Predicated region
      $region49: #{tpu_custom_call.1} parent=5 // pred_check
        %p435 = pneg %p434
      $region50: #{tpu_custom_call.1} parent=5 // pred_check_branch
        %437 = sbr.rel (%p435) target = $region52
      $region51: #{tpu_custom_call.1} parent=5 // pred_region
        // Predicated region
        $region53: #{tpu_custom_call.1} parent=51 // pred_check
          %p438 = pneg %p68
        $region54: #{tpu_custom_call.1} parent=51 // pred_check_branch
          %440 = sbr.rel (%p438) target = $region56
        $region55: #{tpu_custom_call.1} parent=51 // pred_region
          %s441 = sand.u32 %s58, 1
          %s442 = scalar_lea.sflag [#allocation8], %s441
          %s443 = sand.u32 %s58, 1
          %s444 = smul.addr %s443, 8
          %s445 = scalar_lea.vmem [#allocation7], %s444
          %s447 = ssub.s32 128, 128
          %448 = vsyncadd %s442, %s447
          %s449 = sadd.s32 %s42, %s41
          %s450 = smul.addr %s449, 128
          %s451 = scalar_lea.hbm %s1, %s450
          %s453 = sshll.u32 %s445, 4
          %s454 = int_to_ptr.vmem [resolvable:$true] %s453
          %456 = dma.hbm_to_vmem [thread:$0]  %s451, 128, %s454, %s442
        $region56: #{tpu_custom_call.1} parent=51 // pred_fallthru
          _
        // Predicated region
        $region57: #{tpu_custom_call.1} parent=51 // pred_check
          %p457 = pneg %p94
        $region58: #{tpu_custom_call.1} parent=51 // pred_check_branch
          %459 = sbr.rel (%p457) target = $region60
        $region59: #{tpu_custom_call.1} parent=51 // pred_region
          %s460 = sand.u32 %s34, 1
          %s461 = scalar_lea.sflag [#allocation11], %s460
          %s462 = sand.u32 %s84, 1
          %s463 = smul.addr %s462, 8
          %s464 = scalar_lea.vmem [#allocation10], %s463
          %s466 = ssub.s32 128, 128
          %467 = vsyncadd %s461, %s466
          %s468 = smul.addr %s41, 128
          %s469 = scalar_lea.hbm %s2, %s468
          %s471 = sshll.u32 %s464, 4
          %s472 = int_to_ptr.vmem [resolvable:$true] %s471
          %474 = dma.hbm_to_vmem [thread:$0]  %s469, 128, %s472, %s461
        $region60: #{tpu_custom_call.1} parent=51 // pred_fallthru
          _
        // Predicated region
        $region61: #{tpu_custom_call.1} parent=51 // pred_check
          %p475 = pneg %p120
        $region62: #{tpu_custom_call.1} parent=51 // pred_check_branch
          %477 = sbr.rel (%p475) target = $region64
        $region63: #{tpu_custom_call.1} parent=51 // pred_region
          %s478 = sand.u32 %s34, 1
          %s479 = scalar_lea.sflag [#allocation11], %s478
          %s480 = sand.u32 %s110, 1
          %s481 = smul.addr %s480, 8
          %s482 = scalar_lea.vmem [#allocation12], %s481
          %s484 = ssub.s32 128, 128
          %485 = vsyncadd %s479, %s484
          %s486 = smul.addr %s41, 128
          %s487 = scalar_lea.hbm %s3, %s486
          %s489 = sshll.u32 %s482, 4
          %s490 = int_to_ptr.vmem [resolvable:$true] %s489
          %492 = dma.hbm_to_vmem [thread:$0]  %s487, 128, %s490, %s479
        $region64: #{tpu_custom_call.1} parent=51 // pred_fallthru
          _
      $region52: #{tpu_custom_call.1} parent=5 // pred_fallthru
        _
      %p493 = scmp.le.s32.totalorder 1, %s34
      %p494 = scmp.lt.s32.totalorder %s34, 3
      %p495 = pnand %p493, %p494
      %p496 = pneg %p495
      // Predicated region
      $region65: #{tpu_custom_call.1} parent=5 // pred_check
        _
      $region66: #{tpu_custom_call.1} parent=5 // pred_check_branch
        %498 = sbr.rel (%p495) target = $region68
      $region67: #{tpu_custom_call.1} parent=5 // pred_region
        %s499 = ssub.s32 %s34, 1
        %s500 = sand.u32 %s61, 1
        %s501 = scalar_lea.sflag [#allocation8], %s500
        %s502 = sand.u32 %s61, 1
        %s503 = smul.addr %s502, 8
        %s504 = scalar_lea.vmem [#allocation7], %s503
        // Predicated region
        $region69: #{tpu_custom_call.1} parent=67 // pred_check
          %p505 = pneg %p74
        $region70: #{tpu_custom_call.1} parent=67 // pred_check_branch
          %507 = sbr.rel (%p505) target = $region72
        $region71: #{tpu_custom_call.1} parent=67 // pred_region
          %508 = dma.done %s501, 128
        $region72: #{tpu_custom_call.1} parent=67 // pred_fallthru
          _
        %s509 = sand.u32 %s39, 1
        %s510 = scalar_lea.sflag [#allocation11], %s509
        %s511 = sand.u32 %s87, 1
        %s512 = smul.addr %s511, 8
        %s513 = scalar_lea.vmem [#allocation10], %s512
        // Predicated region
        $region73: #{tpu_custom_call.1} parent=67 // pred_check
          %p514 = pneg %p100
        $region74: #{tpu_custom_call.1} parent=67 // pred_check_branch
          %516 = sbr.rel (%p514) target = $region76
        $region75: #{tpu_custom_call.1} parent=67 // pred_region
          %517 = dma.done %s510, 128
        $region76: #{tpu_custom_call.1} parent=67 // pred_fallthru
          _
        %s518 = sand.u32 %s39, 1
        %s519 = scalar_lea.sflag [#allocation11], %s518
        %s520 = sand.u32 %s113, 1
        %s521 = smul.addr %s520, 8
        %s522 = scalar_lea.vmem [#allocation12], %s521
        // Predicated region
        $region77: #{tpu_custom_call.1} parent=67 // pred_check
          %p523 = pneg %p126
        $region78: #{tpu_custom_call.1} parent=67 // pred_check_branch
          %525 = sbr.rel (%p523) target = $region80
        $region79: #{tpu_custom_call.1} parent=67 // pred_region
          %526 = dma.done %s519, 128
        $region80: #{tpu_custom_call.1} parent=67 // pred_fallthru
          _
        // Predicated region
        $region81: #{tpu_custom_call.1} parent=67 // pred_check
          %p527 = pneg %p147
        $region82: #{tpu_custom_call.1} parent=67 // pred_check_branch
          %529 = sbr.rel (%p527) target = $region84
        $region83: #{tpu_custom_call.1} parent=67 // pred_region
          %530 = dma.done [#allocation14], 512
        $region84: #{tpu_custom_call.1} parent=67 // pred_fallthru
          _
        // Predicated region
        $region85: #{tpu_custom_call.1} parent=67 // pred_check
          %p531 = pneg %p168
        $region86: #{tpu_custom_call.1} parent=67 // pred_check_branch
          %533 = sbr.rel (%p531) target = $region88
        $region87: #{tpu_custom_call.1} parent=67 // pred_region
          %534 = dma.done [#allocation14], 512
        $region88: #{tpu_custom_call.1} parent=67 // pred_fallthru
          _
        // Predicated region
        $region89: #{tpu_custom_call.1} parent=67 // pred_check
          %p535 = pneg %p189
        $region90: #{tpu_custom_call.1} parent=67 // pred_check_branch
          %537 = sbr.rel (%p535) target = $region92
        $region91: #{tpu_custom_call.1} parent=67 // pred_region
          %538 = dma.done [#allocation17], 512
        $region92: #{tpu_custom_call.1} parent=67 // pred_fallthru
          _
        // Predicated region
        $region93: #{tpu_custom_call.1} parent=67 // pred_check
          %p539 = pneg %p210
        $region94: #{tpu_custom_call.1} parent=67 // pred_check_branch
          %541 = sbr.rel (%p539) target = $region96
        $region95: #{tpu_custom_call.1} parent=67 // pred_region
          %542 = dma.done [#allocation17], 512
        $region96: #{tpu_custom_call.1} parent=67 // pred_fallthru
          _
        %s543 = sand.u32 %s61, 1
        %s544 = scalar_lea.sflag [#allocation8], %s543
        %s545 = sand.u32 %s61, 1
        %s546 = smul.addr %s545, 8
        %s547 = scalar_lea.vmem [#allocation7], %s546
        %p548 = pneg %p74
        %p549 = pneg %p71
        %s550 = sand.u32 %s39, 1
        %s551 = scalar_lea.sflag [#allocation11], %s550
        %s552 = sand.u32 %s87, 1
        %s553 = smul.addr %s552, 8
        %s554 = scalar_lea.vmem [#allocation10], %s553
        %p555 = pneg %p100
        %p556 = pneg %p97
        %s557 = sand.u32 %s39, 1
        %s558 = scalar_lea.sflag [#allocation11], %s557
        %s559 = sand.u32 %s113, 1
        %s560 = smul.addr %s559, 8
        %s561 = scalar_lea.vmem [#allocation12], %s560
        %p562 = pneg %p126
        %p563 = pneg %p123
        %p564 = pneg %p147
        %p565 = pneg %p144
        %p566 = pneg %p168
        %p567 = pneg %p165
        %p568 = pneg %p189
        %p569 = pneg %p186
        %p570 = pneg %p210
        %p571 = pneg %p207
        %p572 = pneg %p231
        %p573 = pneg %p228
        %p574 = pneg %p252
        %p575 = pneg %p249
        %p576 = pneg %p273
        %p577 = pneg %p270
        %p578 = pneg %p294
        %p579 = pneg %p291
        %p580 = scmp.lt.s32.totalorder %s44, 0
        %s581 = scalar_select %p580, %s44, 0
        %s582 = smul.addr %s581, 8
        %s583 = scalar_lea.vmem %s12, %s582
        %p584 = pneg %p320
        %p585 = pneg %p317
        %p586 = pneg %p348
        %p587 = pneg %p345
        %s588 = sand.u32 %s335, 1
        %s589 = scalar_lea.sflag [#allocation9], %s588
        %s590 = sand.u32 %s335, 1
        %s591 = smul.addr %s590, 8
        %s592 = scalar_lea.vmem [#allocation19], %s591
        %p593 = scmp.lt.s32.totalorder %s44, 0
        %s594 = scalar_select %p593, %s44, 0
        %s595 = smul.addr %s594, 8
        %s596 = scalar_lea.vmem %s12, %s595
        %s597 = smul.u32 %s44, 8
        %p598 = scmp.eq.s32.totalorder %s44, 0
        // Predicated region
        $region97: #{tpu_custom_call.1} parent=67 // pred_check
          %p599 = pneg %p598
        $region98: #{tpu_custom_call.1} parent=67 // pred_check_branch
          %601 = sbr.rel (%p599) target = $region100
        $region99: #{tpu_custom_call.1} parent=67 // pred_region
          %v602 = vld [vmem:[%s513] sm:$0xff]
          %v603 = vld [vmem:[#allocation15] sm:$0xff]
          %v604 = vld [vmem:[#allocation15 + $0x8] sm:$0xff]
          %v605 = vld [vmem:[#allocation15 + $0x10] sm:$0xff]
          %v606 = vld [vmem:[#allocation15 + $0x18] sm:$0xff]
          %v607 = vld [vmem:[%s9] sm:$0x1]
          %v609 = vlaneseq
          %v610 = vshrl.u32 %v609, 7
          %v611 = vsub.s32 0, %v610
          %v612 = vrot.slane %v607, %v611
          %vm614 = vcmask 261120
          %v616 = vsel %vm614, %v602, 0
          %618 = vmatprep.subr.mxu0 0.0
          %619 = vmatpush1.msra.mxu0 %v603
          %620 = vmatprep.subr.mxu0 0.0
          %621 = vmatpush1.msra.mxu0 %v604
          %622 = vmatprep.subr.mxu0 0.0
          %623 = vmatpush1.msra.mxu0 %v605
          %624 = vmatprep.subr.mxu0 0.0
          %625 = vmatpush1.msra.mxu0 %v606
          %626 = vmatprep.subr.mxu0 0.0
          %627 = vmatpush1.msra.mxu0 0.0
          %628 = vmatprep.subr.mxu0 0.0
          %629 = vmatpush1.msra.mxu0 0.0
          %630 = vmatprep.subr.mxu0 0.0
          %631 = vmatpush1.msra.mxu0 0.0
          %632 = vmatprep.subr.mxu0 0.0
          %633 = vmatpush1.msra.mxu0 0.0
          %634 = vmatprep.subr.mxu0 0.0
          %635 = vmatpush1.msra.mxu0 0.0
          %636 = vmatprep.subr.mxu0 0.0
          %637 = vmatpush1.msra.mxu0 0.0
          %638 = vmatprep.subr.mxu0 0.0
          %639 = vmatpush1.msra.mxu0 0.0
          %640 = vmatprep.subr.mxu0 0.0
          %641 = vmatpush1.msra.mxu0 0.0
          %642 = vmatprep.subr.mxu0 0.0
          %643 = vmatpush1.msra.mxu0 0.0
          %644 = vmatprep.subr.mxu0 0.0
          %645 = vmatpush1.msra.mxu0 0.0
          %646 = vmatprep.subr.mxu0 0.0
          %647 = vmatpush1.msra.mxu0 0.0
          %648 = vmatprep.subr.mxu0 0.0
          %649 = vmatpush1.msra.mxu0 0.0
          %650 = vmatprep.subr.mxu0 0.0
          %651 = vmatpush1.msra.mxu0 0.0
          %652 = vmatprep.subr.mxu0 0.0
          %653 = vmatpush1.msra.mxu0 0.0
          %654 = vmatprep.subr.mxu0 0.0
          %655 = vmatpush1.msra.mxu0 0.0
          %656 = vmatprep.subr.mxu0 0.0
          %657 = vmatpush1.msra.mxu0 0.0
          %658 = vmatprep.subr.mxu0 0.0
          %659 = vmatpush1.msra.mxu0 0.0
          %660 = vmatprep.subr.mxu0 0.0
          %661 = vmatpush1.msra.mxu0 0.0
          %662 = vmatprep.subr.mxu0 0.0
          %663 = vmatpush1.msra.mxu0 0.0
          %664 = vmatprep.subr.mxu0 0.0
          %665 = vmatpush1.msra.mxu0 0.0
          %666 = vmatprep.subr.mxu0 0.0
          %667 = vmatpush1.msra.mxu0 0.0
          %668 = vmatprep.subr.mxu0 0.0
          %669 = vmatpush1.msra.mxu0 0.0
          %670 = vmatprep.subr.mxu0 0.0
          %671 = vmatpush1.msra.mxu0 0.0
          %672 = vmatprep.subr.mxu0 0.0
          %673 = vmatpush1.msra.mxu0 0.0
          %674 = vmatprep.subr.mxu0 0.0
          %675 = vmatpush1.msra.mxu0 0.0
          %676 = vmatprep.subr.mxu0 0.0
          %677 = vmatpush1.msra.mxu0 0.0
          %678 = vmatprep.subr.mxu0 0.0
          %679 = vmatpush1.msra.mxu0 0.0
          %680 = vmatprep.subr.mxu0 0.0
          %681 = vmatpush1.msra.mxu0 0.0
          %682 = vmatprep.mubr.f32.mxu0 0.0
          %683 = vmatmul.mubr.f32.gmra.mrb[0].mxu0 %v616
          %v684 = vpop.f32.mrb[0].mxu0
          %v685 = vadd.f32 %v612, %v684
          %v686 = vpop.f32.mrb[0].mxu0
          %687 = vdwg.mxu0
          %688 = vst.msk [vmem:[#allocation2] sm:$0xff] %vm614, %v685
          %v689 = vld [vmem:[%s522] sm:$0xff]
          %v690 = vld [vmem:[#allocation16] sm:$0xff]
          %v691 = vld [vmem:[#allocation16 + $0x8] sm:$0xff]
          %v692 = vld [vmem:[#allocation16 + $0x10] sm:$0xff]
          %v693 = vld [vmem:[#allocation16 + $0x18] sm:$0xff]
          %v694 = vld [vmem:[%s10] sm:$0x1]
          %v696 = vlaneseq
          %v697 = vshrl.u32 %v696, 7
          %v698 = vsub.s32 0, %v697
          %v699 = vrot.slane %v694, %v698
          %v702 = vsel %vm614, %v689, 0
          %704 = vmatprep.subr.mxu0 0.0
          %705 = vmatpush1.msra.mxu0 %v690
          %706 = vmatprep.subr.mxu0 0.0
          %707 = vmatpush1.msra.mxu0 %v691
          %708 = vmatprep.subr.mxu0 0.0
          %709 = vmatpush1.msra.mxu0 %v692
          %710 = vmatprep.subr.mxu0 0.0
          %711 = vmatpush1.msra.mxu0 %v693
          %712 = vmatprep.subr.mxu0 0.0
          %713 = vmatpush1.msra.mxu0 0.0
          %714 = vmatprep.subr.mxu0 0.0
          %715 = vmatpush1.msra.mxu0 0.0
          %716 = vmatprep.subr.mxu0 0.0
          %717 = vmatpush1.msra.mxu0 0.0
          %718 = vmatprep.subr.mxu0 0.0
          %719 = vmatpush1.msra.mxu0 0.0
          %720 = vmatprep.subr.mxu0 0.0
          %721 = vmatpush1.msra.mxu0 0.0
          %722 = vmatprep.subr.mxu0 0.0
          %723 = vmatpush1.msra.mxu0 0.0
          %724 = vmatprep.subr.mxu0 0.0
          %725 = vmatpush1.msra.mxu0 0.0
          %726 = vmatprep.subr.mxu0 0.0
          %727 = vmatpush1.msra.mxu0 0.0
          %728 = vmatprep.subr.mxu0 0.0
          %729 = vmatpush1.msra.mxu0 0.0
          %730 = vmatprep.subr.mxu0 0.0
          %731 = vmatpush1.msra.mxu0 0.0
          %732 = vmatprep.subr.mxu0 0.0
          %733 = vmatpush1.msra.mxu0 0.0
          %734 = vmatprep.subr.mxu0 0.0
          %735 = vmatpush1.msra.mxu0 0.0
          %736 = vmatprep.subr.mxu0 0.0
          %737 = vmatpush1.msra.mxu0 0.0
          %738 = vmatprep.subr.mxu0 0.0
          %739 = vmatpush1.msra.mxu0 0.0
          %740 = vmatprep.subr.mxu0 0.0
          %741 = vmatpush1.msra.mxu0 0.0
          %742 = vmatprep.subr.mxu0 0.0
          %743 = vmatpush1.msra.mxu0 0.0
          %744 = vmatprep.subr.mxu0 0.0
          %745 = vmatpush1.msra.mxu0 0.0
          %746 = vmatprep.subr.mxu0 0.0
          %747 = vmatpush1.msra.mxu0 0.0
          %748 = vmatprep.subr.mxu0 0.0
          %749 = vmatpush1.msra.mxu0 0.0
          %750 = vmatprep.subr.mxu0 0.0
          %751 = vmatpush1.msra.mxu0 0.0
          %752 = vmatprep.subr.mxu0 0.0
          %753 = vmatpush1.msra.mxu0 0.0
          %754 = vmatprep.subr.mxu0 0.0
          %755 = vmatpush1.msra.mxu0 0.0
          %756 = vmatprep.subr.mxu0 0.0
          %757 = vmatpush1.msra.mxu0 0.0
          %758 = vmatprep.subr.mxu0 0.0
          %759 = vmatpush1.msra.mxu0 0.0
          %760 = vmatprep.subr.mxu0 0.0
          %761 = vmatpush1.msra.mxu0 0.0
          %762 = vmatprep.subr.mxu0 0.0
          %763 = vmatpush1.msra.mxu0 0.0
          %764 = vmatprep.subr.mxu0 0.0
          %765 = vmatpush1.msra.mxu0 0.0
          %766 = vmatprep.subr.mxu0 0.0
          %767 = vmatpush1.msra.mxu0 0.0
          %768 = vmatprep.mubr.f32.mxu0 0.0
          %769 = vmatmul.mubr.f32.gmra.mrb[0].mxu0 %v702
          %v770 = vpop.f32.mrb[0].mxu0
          %v771 = vadd.f32 %v699, %v770
          %v772 = vpop.f32.mrb[0].mxu0
          %773 = vdwg.mxu0
          %774 = vst.msk [vmem:[#allocation3] sm:$0xff] %vm614, %v771
        $region100: #{tpu_custom_call.1} parent=67 // pred_fallthru
          _
        %v775 = vld [vmem:[%s504] sm:$0xff]
        %v776 = vld [vmem:[#allocation13] sm:$0xff]
        %v777 = vld [vmem:[#allocation13 + $0x8] sm:$0xff]
        %v778 = vld [vmem:[#allocation13 + $0x10] sm:$0xff]
        %v779 = vld [vmem:[#allocation13 + $0x18] sm:$0xff]
        %v780 = vld [vmem:[%s8] sm:$0x1]
        %v782 = vlaneseq
        %v783 = vshrl.u32 %v782, 7
        %v784 = vsub.s32 0, %v783
        %v785 = vrot.slane %v780, %v784
        %vm787 = vcmask 261120
        %v789 = vsel %vm787, %v775, 0
        %791 = vmatprep.subr.mxu0 0.0
        %792 = vmatpush1.msra.mxu0 %v776
        %793 = vmatprep.subr.mxu0 0.0
        %794 = vmatpush1.msra.mxu0 %v777
        %795 = vmatprep.subr.mxu0 0.0
        %796 = vmatpush1.msra.mxu0 %v778
        %797 = vmatprep.subr.mxu0 0.0
        %798 = vmatpush1.msra.mxu0 %v779
        %799 = vmatprep.subr.mxu0 0.0
        %800 = vmatpush1.msra.mxu0 0.0
        %801 = vmatprep.subr.mxu0 0.0
        %802 = vmatpush1.msra.mxu0 0.0
        %803 = vmatprep.subr.mxu0 0.0
        %804 = vmatpush1.msra.mxu0 0.0
        %805 = vmatprep.subr.mxu0 0.0
        %806 = vmatpush1.msra.mxu0 0.0
        %807 = vmatprep.subr.mxu0 0.0
        %808 = vmatpush1.msra.mxu0 0.0
        %809 = vmatprep.subr.mxu0 0.0
        %810 = vmatpush1.msra.mxu0 0.0
        %811 = vmatprep.subr.mxu0 0.0
        %812 = vmatpush1.msra.mxu0 0.0
        %813 = vmatprep.subr.mxu0 0.0
        %814 = vmatpush1.msra.mxu0 0.0
        %815 = vmatprep.subr.mxu0 0.0
        %816 = vmatpush1.msra.mxu0 0.0
        %817 = vmatprep.subr.mxu0 0.0
        %818 = vmatpush1.msra.mxu0 0.0
        %819 = vmatprep.subr.mxu0 0.0
        %820 = vmatpush1.msra.mxu0 0.0
        %821 = vmatprep.subr.mxu0 0.0
        %822 = vmatpush1.msra.mxu0 0.0
        %823 = vmatprep.subr.mxu0 0.0
        %824 = vmatpush1.msra.mxu0 0.0
        %825 = vmatprep.subr.mxu0 0.0
        %826 = vmatpush1.msra.mxu0 0.0
        %827 = vmatprep.subr.mxu0 0.0
        %828 = vmatpush1.msra.mxu0 0.0
        %829 = vmatprep.subr.mxu0 0.0
        %830 = vmatpush1.msra.mxu0 0.0
        %831 = vmatprep.subr.mxu0 0.0
        %832 = vmatpush1.msra.mxu0 0.0
        %833 = vmatprep.subr.mxu0 0.0
        %834 = vmatpush1.msra.mxu0 0.0
        %835 = vmatprep.subr.mxu0 0.0
        %836 = vmatpush1.msra.mxu0 0.0
        %837 = vmatprep.subr.mxu0 0.0
        %838 = vmatpush1.msra.mxu0 0.0
        %839 = vmatprep.subr.mxu0 0.0
        %840 = vmatpush1.msra.mxu0 0.0
        %841 = vmatprep.subr.mxu0 0.0
        %842 = vmatpush1.msra.mxu0 0.0
        %843 = vmatprep.subr.mxu0 0.0
        %844 = vmatpush1.msra.mxu0 0.0
        %845 = vmatprep.subr.mxu0 0.0
        %846 = vmatpush1.msra.mxu0 0.0
        %847 = vmatprep.subr.mxu0 0.0
        %848 = vmatpush1.msra.mxu0 0.0
        %849 = vmatprep.subr.mxu0 0.0
        %850 = vmatpush1.msra.mxu0 0.0
        %851 = vmatprep.subr.mxu0 0.0
        %852 = vmatpush1.msra.mxu0 0.0
        %853 = vmatprep.subr.mxu0 0.0
        %854 = vmatpush1.msra.mxu0 0.0
        %855 = vmatprep.mubr.f32.mxu0 0.0
        %856 = vmatmul.mubr.f32.gmra.mrb[0].mxu0 %v789
        %v857 = vpop.f32.mrb[0].mxu0
        %v858 = vadd.f32 %v785, %v857
        %v859 = vpop.f32.mrb[0].mxu0
        %860 = vdwg.mxu0
        %v861 = vld [vmem:[%s596] sm:$0xff]
        %vm862 = vcmp.eq.f32.partialorder %v861, 0.0
        %v863 = vlaneseq
        %v864 = vand.u32 %v863, 127
        %v865 = vlaneseq
        %v866 = vshrl.u32 %v865, 7
        %v867 = vstv %s597
        %v868 = vadd.s32 %v866, %v867
        %v869 = vsub.s32 %v864, %v868
        %vm870 = vcmp.lt.s32.totalorder %v869, 0
        %v871 = vsub.s32 0, %v869
        %v872 = vsel %vm870, %v871, %v869
        %v873 = vcvt.s32.f32 %v872
        %vm874 = vcmp.eq.s32.totalorder %v868, 0
        %v875 = vld [vmem:[#allocation2] sm:$0xff]
        %v876 = vld [vmem:[#allocation3] sm:$0xff]
        %vm877 = vcmask 64512
        %v879 = vsel %vm877, %v858, 0
        %v882 = vsel %vm877, %v875, 0
        %884 = vmatprep.subr.mxu0 0.0
        %885 = vmatpush1.xpose.msra.mxu0 %v882
        %886 = vmatprep.subr.mxu0 0.0
        %887 = vmatpush1.xpose.msra.mxu0 0.0
        %888 = vmatprep.subr.mxu0 0.0
        %889 = vmatpush1.xpose.msra.mxu0 0.0
        %890 = vmatprep.subr.mxu0 0.0
        %891 = vmatpush1.xpose.msra.mxu0 0.0
        %892 = vmatprep.subr.mxu0 0.0
        %893 = vmatpush1.xpose.msra.mxu0 0.0
        %894 = vmatprep.subr.mxu0 0.0
        %895 = vmatpush1.xpose.msra.mxu0 0.0
        %896 = vmatprep.subr.mxu0 0.0
        %897 = vmatpush1.xpose.msra.mxu0 0.0
        %898 = vmatprep.subr.mxu0 0.0
        %899 = vmatpush1.xpose.msra.mxu0 0.0
        %900 = vmatprep.subr.mxu0 0.0
        %901 = vmatpush1.xpose.msra.mxu0 0.0
        %902 = vmatprep.subr.mxu0 0.0
        %903 = vmatpush1.xpose.msra.mxu0 0.0
        %904 = vmatprep.subr.mxu0 0.0
        %905 = vmatpush1.xpose.msra.mxu0 0.0
        %906 = vmatprep.subr.mxu0 0.0
        %907 = vmatpush1.xpose.msra.mxu0 0.0
        %908 = vmatprep.subr.mxu0 0.0
        %909 = vmatpush1.xpose.msra.mxu0 0.0
        %910 = vmatprep.subr.mxu0 0.0
        %911 = vmatpush1.xpose.msra.mxu0 0.0
        %912 = vmatprep.subr.mxu0 0.0
        %913 = vmatpush1.xpose.msra.mxu0 0.0
        %914 = vmatprep.subr.mxu0 0.0
        %915 = vmatpush1.xpose.msra.mxu0 0.0
        %916 = vmatprep.subr.mxu0 0.0
        %917 = vmatpush1.xpose.msra.mxu0 0.0
        %918 = vmatprep.subr.mxu0 0.0
        %919 = vmatpush1.xpose.msra.mxu0 0.0
        %920 = vmatprep.subr.mxu0 0.0
        %921 = vmatpush1.xpose.msra.mxu0 0.0
        %922 = vmatprep.subr.mxu0 0.0
        %923 = vmatpush1.xpose.msra.mxu0 0.0
        %924 = vmatprep.subr.mxu0 0.0
        %925 = vmatpush1.xpose.msra.mxu0 0.0
        %926 = vmatprep.subr.mxu0 0.0
        %927 = vmatpush1.xpose.msra.mxu0 0.0
        %928 = vmatprep.subr.mxu0 0.0
        %929 = vmatpush1.xpose.msra.mxu0 0.0
        %930 = vmatprep.subr.mxu0 0.0
        %931 = vmatpush1.xpose.msra.mxu0 0.0
        %932 = vmatprep.subr.mxu0 0.0
        %933 = vmatpush1.xpose.msra.mxu0 0.0
        %934 = vmatprep.subr.mxu0 0.0
        %935 = vmatpush1.xpose.msra.mxu0 0.0
        %936 = vmatprep.subr.mxu0 0.0
        %937 = vmatpush1.xpose.msra.mxu0 0.0
        %938 = vmatprep.subr.mxu0 0.0
        %939 = vmatpush1.xpose.msra.mxu0 0.0
        %940 = vmatprep.subr.mxu0 0.0
        %941 = vmatpush1.xpose.msra.mxu0 0.0
        %942 = vmatprep.subr.mxu0 0.0
        %943 = vmatpush1.xpose.msra.mxu0 0.0
        %944 = vmatprep.subr.mxu0 0.0
        %945 = vmatpush1.xpose.msra.mxu0 0.0
        %946 = vmatprep.subr.mxu0 0.0
        %947 = vmatpush1.xpose.msra.mxu0 0.0
        %948 = vmatprep.mubr.f32.mxu0 0.0
        %949 = vmatmul.mubr.f32.gmra.mrb[0].mxu0 %v879
        %v950 = vpop.f32.mrb[0].mxu0
        %v951 = vadd.f32 0.0, %v950
        %v952 = vpop.f32.mrb[0].mxu0
        %953 = vdwg.mxu0
        %v954 = vmul.f32 %v951, 0.35355338
        %v955 = vsel %vm862, -1e+32, %v954
        %v956 = vsel %vm877, %v955, -inf
        %957 = vmax.xlane.f32.xlu0 %v956
        %v958 = vpop.xlane.xlu0 %957
        %v959 = vsub.f32 %v955, %v958
        %v960 = vmul.f32 %v959, 1.442695
        %v961 = vpow.pop %v960
        %v962 = vsel %vm877, %v961, 0.0
        %963 = vadd.xlane.f32.xlu0 %v962
        %v964 = vpop.xlane.xlu0 %963
        %v965 = vrcp.pop %v964
        %v966 = vmul.f32 %v961, %v965
        %v967 = vmul.f32 %v966, %v861
        %vm968 = vcmask 1047616
        %969 = vrot.lane.b32.xlu0 %v967, 8
        %v970 = vpop.permute.xlu0 %969
        %v971 = vsel %vm968, %v970, %v967
        %972 = vrot.lane.b32.xlu0 %v971, 8
        %v973 = vpop.permute.xlu0 %972
        %v974 = vsel %vm968, %v973, %v967
        %vm975 = vcmp.lt.s32.totalorder %v864, 1
        %977 = vrot.lane.b32.xlu0 %v974, 121
        %v978 = vpop.permute.xlu0 %977
        %v980 = vsel %vm975, 0.0, %v978
        %v981 = vadd.f32 %v967, %v980
        %982 = vrot.lane.b32.xlu0 %v981, 8
        %v983 = vpop.permute.xlu0 %982
        %v984 = vsel %vm968, %v983, %v981
        %985 = vrot.lane.b32.xlu0 %v984, 8
        %v986 = vpop.permute.xlu0 %985
        %v987 = vsel %vm968, %v986, %v981
        %vm988 = vcmp.lt.s32.totalorder %v864, 2
        %990 = vrot.lane.b32.xlu0 %v987, 122
        %v991 = vpop.permute.xlu0 %990
        %v993 = vsel %vm988, 0.0, %v991
        %v994 = vadd.f32 %v981, %v993
        %995 = vrot.lane.b32.xlu0 %v994, 8
        %v996 = vpop.permute.xlu0 %995
        %v997 = vsel %vm968, %v996, %v994
        %998 = vrot.lane.b32.xlu0 %v997, 8
        %v999 = vpop.permute.xlu0 %998
        %v1000 = vsel %vm968, %v999, %v994
        %vm1001 = vcmp.lt.s32.totalorder %v864, 4
        %1003 = vrot.lane.b32.xlu0 %v1000, 124
        %v1004 = vpop.permute.xlu0 %1003
        %v1006 = vsel %vm1001, 0.0, %v1004
        %v1007 = vadd.f32 %v994, %v1006
        %v1008 = vsel %vm877, %v967, 0.0
        %1009 = vadd.xlane.f32.xlu0 %v1008
        %v1010 = vpop.xlane.xlu0 %1009
        %v1011 = vsub.f32 %v1010, %v1007
        %v1012 = vmul.f32 %v1011, %v873
        %v1013 = vmax.f32 %v1012, 0.0
        %v1014 = vrsqrt.pop %v1013
        %v1015 = vmul.f32 %v1013, %v1014
        %vm1016 = vcmp.eq.f32.partialorder %v1013, inf
        %v1017 = vsel %vm1016, %v1013, %v1015
        %vm1018 = vcmp.eq.f32.partialorder %v1013, 0.0
        %v1019 = vand.u32 %v1013, 2147483648
        %v1020 = vsel %vm1018, %v1019, %v1017
        %s1021 = sld [smem:[#allocation6]]
        %v1022 = vstv %s1021
        %v1023 = vmul.f32 %v1020, %v1022
        %v1024 = vmul.f32 %v1023, 1.442695
        %v1025 = vpow.pop %v1024
        %v1026 = vmax.f32 %v1025, 1e-05
        %v1027 = vmul.f32 %v954, %v1026
        %v1028 = vsel %vm862, -1e+32, %v1027
        %v1029 = vsel %vm877, %v1028, -inf
        %1030 = vmax.xlane.f32.xlu0 %v1029
        %v1031 = vpop.xlane.xlu0 %1030
        %v1032 = vsub.f32 %v1028, %v1031
        %v1033 = vmul.f32 %v1032, 1.442695
        %v1034 = vpow.pop %v1033
        %v1035 = vsel %vm877, %v1034, 0.0
        %1036 = vadd.xlane.f32.xlu0 %v1035
        %v1037 = vpop.xlane.xlu0 %1036
        %v1038 = vrcp.pop %v1037
        %v1039 = vmul.f32 %v1034, %v1038
        %v1040 = vsel %vm874, 0.0, %v1039
        %v1042 = vsel %vm877, %v1040, 0
        %1044 = vmatprep.subr.mxu0 0.0
        %1045 = vmatpush1.msra.mxu0 %v876
        %1046 = vmatprep.subr.mxu0 0.0
        %1047 = vmatpush1.msra.mxu0 0.0
        %1048 = vmatprep.subr.mxu0 0.0
        %1049 = vmatpush1.msra.mxu0 0.0
        %1050 = vmatprep.subr.mxu0 0.0
        %1051 = vmatpush1.msra.mxu0 0.0
        %1052 = vmatprep.subr.mxu0 0.0
        %1053 = vmatpush1.msra.mxu0 0.0
        %1054 = vmatprep.subr.mxu0 0.0
        %1055 = vmatpush1.msra.mxu0 0.0
        %1056 = vmatprep.subr.mxu0 0.0
        %1057 = vmatpush1.msra.mxu0 0.0
        %1058 = vmatprep.subr.mxu0 0.0
        %1059 = vmatpush1.msra.mxu0 0.0
        %1060 = vmatprep.subr.mxu0 0.0
        %1061 = vmatpush1.msra.mxu0 0.0
        %1062 = vmatprep.subr.mxu0 0.0
        %1063 = vmatpush1.msra.mxu0 0.0
        %1064 = vmatprep.subr.mxu0 0.0
        %1065 = vmatpush1.msra.mxu0 0.0
        %1066 = vmatprep.subr.mxu0 0.0
        %1067 = vmatpush1.msra.mxu0 0.0
        %1068 = vmatprep.subr.mxu0 0.0
        %1069 = vmatpush1.msra.mxu0 0.0
        %1070 = vmatprep.subr.mxu0 0.0
        %1071 = vmatpush1.msra.mxu0 0.0
        %1072 = vmatprep.subr.mxu0 0.0
        %1073 = vmatpush1.msra.mxu0 0.0
        %1074 = vmatprep.subr.mxu0 0.0
        %1075 = vmatpush1.msra.mxu0 0.0
        %1076 = vmatprep.subr.mxu0 0.0
        %1077 = vmatpush1.msra.mxu0 0.0
        %1078 = vmatprep.subr.mxu0 0.0
        %1079 = vmatpush1.msra.mxu0 0.0
        %1080 = vmatprep.subr.mxu0 0.0
        %1081 = vmatpush1.msra.mxu0 0.0
        %1082 = vmatprep.subr.mxu0 0.0
        %1083 = vmatpush1.msra.mxu0 0.0
        %1084 = vmatprep.subr.mxu0 0.0
        %1085 = vmatpush1.msra.mxu0 0.0
        %1086 = vmatprep.subr.mxu0 0.0
        %1087 = vmatpush1.msra.mxu0 0.0
        %1088 = vmatprep.subr.mxu0 0.0
        %1089 = vmatpush1.msra.mxu0 0.0
        %1090 = vmatprep.subr.mxu0 0.0
        %1091 = vmatpush1.msra.mxu0 0.0
        %1092 = vmatprep.subr.mxu0 0.0
        %1093 = vmatpush1.msra.mxu0 0.0
        %1094 = vmatprep.subr.mxu0 0.0
        %1095 = vmatpush1.msra.mxu0 0.0
        %1096 = vmatprep.subr.mxu0 0.0
        %1097 = vmatpush1.msra.mxu0 0.0
        %1098 = vmatprep.subr.mxu0 0.0
        %1099 = vmatpush1.msra.mxu0 0.0
        %1100 = vmatprep.subr.mxu0 0.0
        %1101 = vmatpush1.msra.mxu0 0.0
        %1102 = vmatprep.subr.mxu0 0.0
        %1103 = vmatpush1.msra.mxu0 0.0
        %1104 = vmatprep.subr.mxu0 0.0
        %1105 = vmatpush1.msra.mxu0 0.0
        %1106 = vmatprep.subr.mxu0 0.0
        %1107 = vmatpush1.msra.mxu0 0.0
        %1108 = vmatprep.mubr.f32.mxu0 0.0
        %1109 = vmatmul.mubr.f32.gmra.mrb[0].mxu0 %v1042
        %v1110 = vpop.f32.mrb[0].mxu0
        %v1111 = vadd.f32 0.0, %v1110
        %v1112 = vpop.f32.mrb[0].mxu0
        %1113 = vdwg.mxu0
        %v1114 = vld [vmem:[#allocation18] sm:$0xff]
        %v1116 = vsel %vm877, %v1111, 0
        %1118 = vmatprep.subr.mxu0 0.0
        %1119 = vmatpush1.msra.mxu0 %v1114
        %1120 = vmatprep.subr.mxu0 0.0
        %1121 = vmatpush1.msra.mxu0 0.0
        %1122 = vmatprep.subr.mxu0 0.0
        %1123 = vmatpush1.msra.mxu0 0.0
        %1124 = vmatprep.subr.mxu0 0.0
        %1125 = vmatpush1.msra.mxu0 0.0
        %1126 = vmatprep.subr.mxu0 0.0
        %1127 = vmatpush1.msra.mxu0 0.0
        %1128 = vmatprep.subr.mxu0 0.0
        %1129 = vmatpush1.msra.mxu0 0.0
        %1130 = vmatprep.subr.mxu0 0.0
        %1131 = vmatpush1.msra.mxu0 0.0
        %1132 = vmatprep.subr.mxu0 0.0
        %1133 = vmatpush1.msra.mxu0 0.0
        %1134 = vmatprep.subr.mxu0 0.0
        %1135 = vmatpush1.msra.mxu0 0.0
        %1136 = vmatprep.subr.mxu0 0.0
        %1137 = vmatpush1.msra.mxu0 0.0
        %1138 = vmatprep.subr.mxu0 0.0
        %1139 = vmatpush1.msra.mxu0 0.0
        %1140 = vmatprep.subr.mxu0 0.0
        %1141 = vmatpush1.msra.mxu0 0.0
        %1142 = vmatprep.subr.mxu0 0.0
        %1143 = vmatpush1.msra.mxu0 0.0
        %1144 = vmatprep.subr.mxu0 0.0
        %1145 = vmatpush1.msra.mxu0 0.0
        %1146 = vmatprep.subr.mxu0 0.0
        %1147 = vmatpush1.msra.mxu0 0.0
        %1148 = vmatprep.subr.mxu0 0.0
        %1149 = vmatpush1.msra.mxu0 0.0
        %1150 = vmatprep.subr.mxu0 0.0
        %1151 = vmatpush1.msra.mxu0 0.0
        %1152 = vmatprep.subr.mxu0 0.0
        %1153 = vmatpush1.msra.mxu0 0.0
        %1154 = vmatprep.subr.mxu0 0.0
        %1155 = vmatpush1.msra.mxu0 0.0
        %1156 = vmatprep.subr.mxu0 0.0
        %1157 = vmatpush1.msra.mxu0 0.0
        %1158 = vmatprep.subr.mxu0 0.0
        %1159 = vmatpush1.msra.mxu0 0.0
        %1160 = vmatprep.subr.mxu0 0.0
        %1161 = vmatpush1.msra.mxu0 0.0
        %1162 = vmatprep.subr.mxu0 0.0
        %1163 = vmatpush1.msra.mxu0 0.0
        %1164 = vmatprep.subr.mxu0 0.0
        %1165 = vmatpush1.msra.mxu0 0.0
        %1166 = vmatprep.subr.mxu0 0.0
        %1167 = vmatpush1.msra.mxu0 0.0
        %1168 = vmatprep.subr.mxu0 0.0
        %1169 = vmatpush1.msra.mxu0 0.0
        %1170 = vmatprep.subr.mxu0 0.0
        %1171 = vmatpush1.msra.mxu0 0.0
        %1172 = vmatprep.subr.mxu0 0.0
        %1173 = vmatpush1.msra.mxu0 0.0
        %1174 = vmatprep.subr.mxu0 0.0
        %1175 = vmatpush1.msra.mxu0 0.0
        %1176 = vmatprep.subr.mxu0 0.0
        %1177 = vmatpush1.msra.mxu0 0.0
        %1178 = vmatprep.subr.mxu0 0.0
        %1179 = vmatpush1.msra.mxu0 0.0
        %1180 = vmatprep.subr.mxu0 0.0
        %1181 = vmatpush1.msra.mxu0 0.0
        %1182 = vmatprep.mubr.f32.mxu0 0.0
        %1183 = vmatmul.mubr.f32.gmra.mrb[0].mxu0 %v1116
        %v1184 = vpop.f32.mrb[0].mxu0
        %v1185 = vadd.f32 0.0, %v1184
        %v1186 = vpop.f32.mrb[0].mxu0
        %1187 = vdwg.mxu0
        %1188 = vst.msk [vmem:[#allocation4] sm:$0xff] %vm787, %v1185
        %v1189 = vld [vmem:[#allocation2] sm:$0xff]
        %v1190 = vld [vmem:[#allocation3] sm:$0xff]
        %1191 = vrot.lane.b32.xlu0 %v858, 120
        %v1192 = vpop.permute.xlu0 %1191
        %1194 = vrot.lane.b32.xlu0 %v1189, 120
        %v1195 = vpop.permute.xlu0 %1194
        %v1196 = vsel %vm877, %v1192, 0
        %v1198 = vsel %vm877, %v1195, 0
        %1200 = vmatprep.subr.mxu0 0.0
        %1201 = vmatpush1.xpose.msra.mxu0 %v1198
        %1202 = vmatprep.subr.mxu0 0.0
        %1203 = vmatpush1.xpose.msra.mxu0 0.0
        %1204 = vmatprep.subr.mxu0 0.0
        %1205 = vmatpush1.xpose.msra.mxu0 0.0
        %1206 = vmatprep.subr.mxu0 0.0
        %1207 = vmatpush1.xpose.msra.mxu0 0.0
        %1208 = vmatprep.subr.mxu0 0.0
        %1209 = vmatpush1.xpose.msra.mxu0 0.0
        %1210 = vmatprep.subr.mxu0 0.0
        %1211 = vmatpush1.xpose.msra.mxu0 0.0
        %1212 = vmatprep.subr.mxu0 0.0
        %1213 = vmatpush1.xpose.msra.mxu0 0.0
        %1214 = vmatprep.subr.mxu0 0.0
        %1215 = vmatpush1.xpose.msra.mxu0 0.0
        %1216 = vmatprep.subr.mxu0 0.0
        %1217 = vmatpush1.xpose.msra.mxu0 0.0
        %1218 = vmatprep.subr.mxu0 0.0
        %1219 = vmatpush1.xpose.msra.mxu0 0.0
        %1220 = vmatprep.subr.mxu0 0.0
        %1221 = vmatpush1.xpose.msra.mxu0 0.0
        %1222 = vmatprep.subr.mxu0 0.0
        %1223 = vmatpush1.xpose.msra.mxu0 0.0
        %1224 = vmatprep.subr.mxu0 0.0
        %1225 = vmatpush1.xpose.msra.mxu0 0.0
        %1226 = vmatprep.subr.mxu0 0.0
        %1227 = vmatpush1.xpose.msra.mxu0 0.0
        %1228 = vmatprep.subr.mxu0 0.0
        %1229 = vmatpush1.xpose.msra.mxu0 0.0
        %1230 = vmatprep.subr.mxu0 0.0
        %1231 = vmatpush1.xpose.msra.mxu0 0.0
        %1232 = vmatprep.subr.mxu0 0.0
        %1233 = vmatpush1.xpose.msra.mxu0 0.0
        %1234 = vmatprep.subr.mxu0 0.0
        %1235 = vmatpush1.xpose.msra.mxu0 0.0
        %1236 = vmatprep.subr.mxu0 0.0
        %1237 = vmatpush1.xpose.msra.mxu0 0.0
        %1238 = vmatprep.subr.mxu0 0.0
        %1239 = vmatpush1.xpose.msra.mxu0 0.0
        %1240 = vmatprep.subr.mxu0 0.0
        %1241 = vmatpush1.xpose.msra.mxu0 0.0
        %1242 = vmatprep.subr.mxu0 0.0
        %1243 = vmatpush1.xpose.msra.mxu0 0.0
        %1244 = vmatprep.subr.mxu0 0.0
        %1245 = vmatpush1.xpose.msra.mxu0 0.0
        %1246 = vmatprep.subr.mxu0 0.0
        %1247 = vmatpush1.xpose.msra.mxu0 0.0
        %1248 = vmatprep.subr.mxu0 0.0
        %1249 = vmatpush1.xpose.msra.mxu0 0.0
        %1250 = vmatprep.subr.mxu0 0.0
        %1251 = vmatpush1.xpose.msra.mxu0 0.0
        %1252 = vmatprep.subr.mxu0 0.0
        %1253 = vmatpush1.xpose.msra.mxu0 0.0
        %1254 = vmatprep.subr.mxu0 0.0
        %1255 = vmatpush1.xpose.msra.mxu0 0.0
        %1256 = vmatprep.subr.mxu0 0.0
        %1257 = vmatpush1.xpose.msra.mxu0 0.0
        %1258 = vmatprep.subr.mxu0 0.0
        %1259 = vmatpush1.xpose.msra.mxu0 0.0
        %1260 = vmatprep.subr.mxu0 0.0
        %1261 = vmatpush1.xpose.msra.mxu0 0.0
        %1262 = vmatprep.subr.mxu0 0.0
        %1263 = vmatpush1.xpose.msra.mxu0 0.0
        %1264 = vmatprep.mubr.f32.mxu0 0.0
        %1265 = vmatmul.mubr.f32.gmra.mrb[0].mxu0 %v1196
        %v1266 = vpop.f32.mrb[0].mxu0
        %v1267 = vadd.f32 0.0, %v1266
        %v1268 = vpop.f32.mrb[0].mxu0
        %1269 = vdwg.mxu0
        %v1270 = vmul.f32 %v1267, 0.35355338
        %v1271 = vsel %vm862, -1e+32, %v1270
        %v1272 = vsel %vm877, %v1271, -inf
        %1273 = vmax.xlane.f32.xlu0 %v1272
        %v1274 = vpop.xlane.xlu0 %1273
        %v1275 = vsub.f32 %v1271, %v1274
        %v1276 = vmul.f32 %v1275, 1.442695
        %v1277 = vpow.pop %v1276
        %v1278 = vsel %vm877, %v1277, 0.0
        %1279 = vadd.xlane.f32.xlu0 %v1278
        %v1280 = vpop.xlane.xlu0 %1279
        %v1281 = vrcp.pop %v1280
        %v1282 = vmul.f32 %v1277, %v1281
        %v1283 = vmul.f32 %v1282, %v861
        %1284 = vrot.lane.b32.xlu0 %v1283, 8
        %v1285 = vpop.permute.xlu0 %1284
        %v1286 = vsel %vm968, %v1285, %v1283
        %1287 = vrot.lane.b32.xlu0 %v1286, 8
        %v1288 = vpop.permute.xlu0 %1287
        %v1289 = vsel %vm968, %v1288, %v1283
        %1291 = vrot.lane.b32.xlu0 %v1289, 121
        %v1292 = vpop.permute.xlu0 %1291
        %v1294 = vsel %vm975, 0.0, %v1292
        %v1295 = vadd.f32 %v1283, %v1294
        %1296 = vrot.lane.b32.xlu0 %v1295, 8
        %v1297 = vpop.permute.xlu0 %1296
        %v1298 = vsel %vm968, %v1297, %v1295
        %1299 = vrot.lane.b32.xlu0 %v1298, 8
        %v1300 = vpop.permute.xlu0 %1299
        %v1301 = vsel %vm968, %v1300, %v1295
        %1303 = vrot.lane.b32.xlu0 %v1301, 122
        %v1304 = vpop.permute.xlu0 %1303
        %v1306 = vsel %vm988, 0.0, %v1304
        %v1307 = vadd.f32 %v1295, %v1306
        %1308 = vrot.lane.b32.xlu0 %v1307, 8
        %v1309 = vpop.permute.xlu0 %1308
        %v1310 = vsel %vm968, %v1309, %v1307
        %1311 = vrot.lane.b32.xlu0 %v1310, 8
        %v1312 = vpop.permute.xlu0 %1311
        %v1313 = vsel %vm968, %v1312, %v1307
        %1315 = vrot.lane.b32.xlu0 %v1313, 124
        %v1316 = vpop.permute.xlu0 %1315
        %v1318 = vsel %vm1001, 0.0, %v1316
        %v1319 = vadd.f32 %v1307, %v1318
        %v1320 = vsel %vm877, %v1283, 0.0
        %1321 = vadd.xlane.f32.xlu0 %v1320
        %v1322 = vpop.xlane.xlu0 %1321
        %v1323 = vsub.f32 %v1322, %v1319
        %v1324 = vmul.f32 %v1323, %v873
        %v1325 = vmax.f32 %v1324, 0.0
        %v1326 = vrsqrt.pop %v1325
        %v1327 = vmul.f32 %v1325, %v1326
        %vm1328 = vcmp.eq.f32.partialorder %v1325, inf
        %v1329 = vsel %vm1328, %v1325, %v1327
        %vm1330 = vcmp.eq.f32.partialorder %v1325, 0.0
        %v1331 = vand.u32 %v1325, 2147483648
        %v1332 = vsel %vm1330, %v1331, %v1329
        %s1333 = sld [smem:[#allocation6 + $0x1]]
        %v1334 = vstv %s1333
        %v1335 = vmul.f32 %v1332, %v1334
        %v1336 = vmul.f32 %v1335, 1.442695
        %v1337 = vpow.pop %v1336
        %v1338 = vmax.f32 %v1337, 1e-05
        %v1339 = vmul.f32 %v1270, %v1338
        %v1340 = vsel %vm862, -1e+32, %v1339
        %v1341 = vsel %vm877, %v1340, -inf
        %1342 = vmax.xlane.f32.xlu0 %v1341
        %v1343 = vpop.xlane.xlu0 %1342
        %v1344 = vsub.f32 %v1340, %v1343
        %v1345 = vmul.f32 %v1344, 1.442695
        %v1346 = vpow.pop %v1345
        %v1347 = vsel %vm877, %v1346, 0.0
        %1348 = vadd.xlane.f32.xlu0 %v1347
        %v1349 = vpop.xlane.xlu0 %1348
        %v1350 = vrcp.pop %v1349
        %v1351 = vmul.f32 %v1346, %v1350
        %v1352 = vsel %vm874, 0.0, %v1351
        %1354 = vrot.lane.b32.xlu0 %v1190, 120
        %v1355 = vpop.permute.xlu0 %1354
        %v1358 = vsel %vm877, %v1352, 0
        %1360 = vmatprep.subr.mxu0 0.0
        %1361 = vmatpush1.msra.mxu0 %v1355
        %1362 = vmatprep.subr.mxu0 0.0
        %1363 = vmatpush1.msra.mxu0 0.0
        %1364 = vmatprep.subr.mxu0 0.0
        %1365 = vmatpush1.msra.mxu0 0.0
        %1366 = vmatprep.subr.mxu0 0.0
        %1367 = vmatpush1.msra.mxu0 0.0
        %1368 = vmatprep.subr.mxu0 0.0
        %1369 = vmatpush1.msra.mxu0 0.0
        %1370 = vmatprep.subr.mxu0 0.0
        %1371 = vmatpush1.msra.mxu0 0.0
        %1372 = vmatprep.subr.mxu0 0.0
        %1373 = vmatpush1.msra.mxu0 0.0
        %1374 = vmatprep.subr.mxu0 0.0
        %1375 = vmatpush1.msra.mxu0 0.0
        %1376 = vmatprep.subr.mxu0 0.0
        %1377 = vmatpush1.msra.mxu0 0.0
        %1378 = vmatprep.subr.mxu0 0.0
        %1379 = vmatpush1.msra.mxu0 0.0
        %1380 = vmatprep.subr.mxu0 0.0
        %1381 = vmatpush1.msra.mxu0 0.0
        %1382 = vmatprep.subr.mxu0 0.0
        %1383 = vmatpush1.msra.mxu0 0.0
        %1384 = vmatprep.subr.mxu0 0.0
        %1385 = vmatpush1.msra.mxu0 0.0
        %1386 = vmatprep.subr.mxu0 0.0
        %1387 = vmatpush1.msra.mxu0 0.0
        %1388 = vmatprep.subr.mxu0 0.0
        %1389 = vmatpush1.msra.mxu0 0.0
        %1390 = vmatprep.subr.mxu0 0.0
        %1391 = vmatpush1.msra.mxu0 0.0
        %1392 = vmatprep.subr.mxu0 0.0
        %1393 = vmatpush1.msra.mxu0 0.0
        %1394 = vmatprep.subr.mxu0 0.0
        %1395 = vmatpush1.msra.mxu0 0.0
        %1396 = vmatprep.subr.mxu0 0.0
        %1397 = vmatpush1.msra.mxu0 0.0
        %1398 = vmatprep.subr.mxu0 0.0
        %1399 = vmatpush1.msra.mxu0 0.0
        %1400 = vmatprep.subr.mxu0 0.0
        %1401 = vmatpush1.msra.mxu0 0.0
        %1402 = vmatprep.subr.mxu0 0.0
        %1403 = vmatpush1.msra.mxu0 0.0
        %1404 = vmatprep.subr.mxu0 0.0
        %1405 = vmatpush1.msra.mxu0 0.0
        %1406 = vmatprep.subr.mxu0 0.0
        %1407 = vmatpush1.msra.mxu0 0.0
        %1408 = vmatprep.subr.mxu0 0.0
        %1409 = vmatpush1.msra.mxu0 0.0
        %1410 = vmatprep.subr.mxu0 0.0
        %1411 = vmatpush1.msra.mxu0 0.0
        %1412 = vmatprep.subr.mxu0 0.0
        %1413 = vmatpush1.msra.mxu0 0.0
        %1414 = vmatprep.subr.mxu0 0.0
        %1415 = vmatpush1.msra.mxu0 0.0
        %1416 = vmatprep.subr.mxu0 0.0
        %1417 = vmatpush1.msra.mxu0 0.0
        %1418 = vmatprep.subr.mxu0 0.0
        %1419 = vmatpush1.msra.mxu0 0.0
        %1420 = vmatprep.subr.mxu0 0.0
        %1421 = vmatpush1.msra.mxu0 0.0
        %1422 = vmatprep.subr.mxu0 0.0
        %1423 = vmatpush1.msra.mxu0 0.0
        %1424 = vmatprep.mubr.f32.mxu0 0.0
        %1425 = vmatmul.mubr.f32.gmra.mrb[0].mxu0 %v1358
        %v1426 = vpop.f32.mrb[0].mxu0
        %v1427 = vadd.f32 0.0, %v1426
        %v1428 = vpop.f32.mrb[0].mxu0
        %1429 = vdwg.mxu0
        %v1430 = vld [vmem:[#allocation18 + $0x8] sm:$0xff]
        %v1432 = vsel %vm877, %v1427, 0
        %1434 = vmatprep.subr.mxu0 0.0
        %1435 = vmatpush1.msra.mxu0 %v1430
        %1436 = vmatprep.subr.mxu0 0.0
        %1437 = vmatpush1.msra.mxu0 0.0
        %1438 = vmatprep.subr.mxu0 0.0
        %1439 = vmatpush1.msra.mxu0 0.0
        %1440 = vmatprep.subr.mxu0 0.0
        %1441 = vmatpush1.msra.mxu0 0.0
        %1442 = vmatprep.subr.mxu0 0.0
        %1443 = vmatpush1.msra.mxu0 0.0
        %1444 = vmatprep.subr.mxu0 0.0
        %1445 = vmatpush1.msra.mxu0 0.0
        %1446 = vmatprep.subr.mxu0 0.0
        %1447 = vmatpush1.msra.mxu0 0.0
        %1448 = vmatprep.subr.mxu0 0.0
        %1449 = vmatpush1.msra.mxu0 0.0
        %1450 = vmatprep.subr.mxu0 0.0
        %1451 = vmatpush1.msra.mxu0 0.0
        %1452 = vmatprep.subr.mxu0 0.0
        %1453 = vmatpush1.msra.mxu0 0.0
        %1454 = vmatprep.subr.mxu0 0.0
        %1455 = vmatpush1.msra.mxu0 0.0
        %1456 = vmatprep.subr.mxu0 0.0
        %1457 = vmatpush1.msra.mxu0 0.0
        %1458 = vmatprep.subr.mxu0 0.0
        %1459 = vmatpush1.msra.mxu0 0.0
        %1460 = vmatprep.subr.mxu0 0.0
        %1461 = vmatpush1.msra.mxu0 0.0
        %1462 = vmatprep.subr.mxu0 0.0
        %1463 = vmatpush1.msra.mxu0 0.0
        %1464 = vmatprep.subr.mxu0 0.0
        %1465 = vmatpush1.msra.mxu0 0.0
        %1466 = vmatprep.subr.mxu0 0.0
        %1467 = vmatpush1.msra.mxu0 0.0
        %1468 = vmatprep.subr.mxu0 0.0
        %1469 = vmatpush1.msra.mxu0 0.0
        %1470 = vmatprep.subr.mxu0 0.0
        %1471 = vmatpush1.msra.mxu0 0.0
        %1472 = vmatprep.subr.mxu0 0.0
        %1473 = vmatpush1.msra.mxu0 0.0
        %1474 = vmatprep.subr.mxu0 0.0
        %1475 = vmatpush1.msra.mxu0 0.0
        %1476 = vmatprep.subr.mxu0 0.0
        %1477 = vmatpush1.msra.mxu0 0.0
        %1478 = vmatprep.subr.mxu0 0.0
        %1479 = vmatpush1.msra.mxu0 0.0
        %1480 = vmatprep.subr.mxu0 0.0
        %1481 = vmatpush1.msra.mxu0 0.0
        %1482 = vmatprep.subr.mxu0 0.0
        %1483 = vmatpush1.msra.mxu0 0.0
        %1484 = vmatprep.subr.mxu0 0.0
        %1485 = vmatpush1.msra.mxu0 0.0
        %1486 = vmatprep.subr.mxu0 0.0
        %1487 = vmatpush1.msra.mxu0 0.0
        %1488 = vmatprep.subr.mxu0 0.0
        %1489 = vmatpush1.msra.mxu0 0.0
        %1490 = vmatprep.subr.mxu0 0.0
        %1491 = vmatpush1.msra.mxu0 0.0
        %1492 = vmatprep.subr.mxu0 0.0
        %1493 = vmatpush1.msra.mxu0 0.0
        %1494 = vmatprep.subr.mxu0 0.0
        %1495 = vmatpush1.msra.mxu0 0.0
        %1496 = vmatprep.subr.mxu0 0.0
        %1497 = vmatpush1.msra.mxu0 0.0
        %1498 = vmatprep.mubr.f32.mxu0 0.0
        %1499 = vmatmul.mubr.f32.gmra.mrb[0].mxu0 %v1432
        %v1500 = vpop.f32.mrb[0].mxu0
        %v1501 = vadd.f32 0.0, %v1500
        %v1502 = vpop.f32.mrb[0].mxu0
        %1503 = vdwg.mxu0
        %v1504 = vld [vmem:[#allocation4] sm:$0xff]
        %v1505 = vadd.f32 %v1504, %v1501
        %1506 = vst.msk [vmem:[#allocation4] sm:$0xff] %vm787, %v1505
        %v1507 = vld [vmem:[#allocation2] sm:$0xff]
        %v1508 = vld [vmem:[#allocation3] sm:$0xff]
        %1509 = vrot.lane.b32.xlu0 %v858, 112
        %v1510 = vpop.permute.xlu0 %1509
        %1512 = vrot.lane.b32.xlu0 %v1507, 112
        %v1513 = vpop.permute.xlu0 %1512
        %v1514 = vsel %vm877, %v1510, 0
        %v1516 = vsel %vm877, %v1513, 0
        %1518 = vmatprep.subr.mxu0 0.0
        %1519 = vmatpush1.xpose.msra.mxu0 %v1516
        %1520 = vmatprep.subr.mxu0 0.0
        %1521 = vmatpush1.xpose.msra.mxu0 0.0
        %1522 = vmatprep.subr.mxu0 0.0
        %1523 = vmatpush1.xpose.msra.mxu0 0.0
        %1524 = vmatprep.subr.mxu0 0.0
        %1525 = vmatpush1.xpose.msra.mxu0 0.0
        %1526 = vmatprep.subr.mxu0 0.0
        %1527 = vmatpush1.xpose.msra.mxu0 0.0
        %1528 = vmatprep.subr.mxu0 0.0
        %1529 = vmatpush1.xpose.msra.mxu0 0.0
        %1530 = vmatprep.subr.mxu0 0.0
        %1531 = vmatpush1.xpose.msra.mxu0 0.0
        %1532 = vmatprep.subr.mxu0 0.0
        %1533 = vmatpush1.xpose.msra.mxu0 0.0
        %1534 = vmatprep.subr.mxu0 0.0
        %1535 = vmatpush1.xpose.msra.mxu0 0.0
        %1536 = vmatprep.subr.mxu0 0.0
        %1537 = vmatpush1.xpose.msra.mxu0 0.0
        %1538 = vmatprep.subr.mxu0 0.0
        %1539 = vmatpush1.xpose.msra.mxu0 0.0
        %1540 = vmatprep.subr.mxu0 0.0
        %1541 = vmatpush1.xpose.msra.mxu0 0.0
        %1542 = vmatprep.subr.mxu0 0.0
        %1543 = vmatpush1.xpose.msra.mxu0 0.0
        %1544 = vmatprep.subr.mxu0 0.0
        %1545 = vmatpush1.xpose.msra.mxu0 0.0
        %1546 = vmatprep.subr.mxu0 0.0
        %1547 = vmatpush1.xpose.msra.mxu0 0.0
        %1548 = vmatprep.subr.mxu0 0.0
        %1549 = vmatpush1.xpose.msra.mxu0 0.0
        %1550 = vmatprep.subr.mxu0 0.0
        %1551 = vmatpush1.xpose.msra.mxu0 0.0
        %1552 = vmatprep.subr.mxu0 0.0
        %1553 = vmatpush1.xpose.msra.mxu0 0.0
        %1554 = vmatprep.subr.mxu0 0.0
        %1555 = vmatpush1.xpose.msra.mxu0 0.0
        %1556 = vmatprep.subr.mxu0 0.0
        %1557 = vmatpush1.xpose.msra.mxu0 0.0
        %1558 = vmatprep.subr.mxu0 0.0
        %1559 = vmatpush1.xpose.msra.mxu0 0.0
        %1560 = vmatprep.subr.mxu0 0.0
        %1561 = vmatpush1.xpose.msra.mxu0 0.0
        %1562 = vmatprep.subr.mxu0 0.0
        %1563 = vmatpush1.xpose.msra.mxu0 0.0
        %1564 = vmatprep.subr.mxu0 0.0
        %1565 = vmatpush1.xpose.msra.mxu0 0.0
        %1566 = vmatprep.subr.mxu0 0.0
        %1567 = vmatpush1.xpose.msra.mxu0 0.0
        %1568 = vmatprep.subr.mxu0 0.0
        %1569 = vmatpush1.xpose.msra.mxu0 0.0
        %1570 = vmatprep.subr.mxu0 0.0
        %1571 = vmatpush1.xpose.msra.mxu0 0.0
        %1572 = vmatprep.subr.mxu0 0.0
        %1573 = vmatpush1.xpose.msra.mxu0 0.0
        %1574 = vmatprep.subr.mxu0 0.0
        %1575 = vmatpush1.xpose.msra.mxu0 0.0
        %1576 = vmatprep.subr.mxu0 0.0
        %1577 = vmatpush1.xpose.msra.mxu0 0.0
        %1578 = vmatprep.subr.mxu0 0.0
        %1579 = vmatpush1.xpose.msra.mxu0 0.0
        %1580 = vmatprep.subr.mxu0 0.0
        %1581 = vmatpush1.xpose.msra.mxu0 0.0
        %1582 = vmatprep.mubr.f32.mxu0 0.0
        %1583 = vmatmul.mubr.f32.gmra.mrb[0].mxu0 %v1514
        %v1584 = vpop.f32.mrb[0].mxu0
        %v1585 = vadd.f32 0.0, %v1584
        %v1586 = vpop.f32.mrb[0].mxu0
        %1587 = vdwg.mxu0
        %v1588 = vmul.f32 %v1585, 0.35355338
        %v1589 = vsel %vm862, -1e+32, %v1588
        %v1590 = vsel %vm877, %v1589, -inf
        %1591 = vmax.xlane.f32.xlu0 %v1590
        %v1592 = vpop.xlane.xlu0 %1591
        %v1593 = vsub.f32 %v1589, %v1592
        %v1594 = vmul.f32 %v1593, 1.442695
        %v1595 = vpow.pop %v1594
        %v1596 = vsel %vm877, %v1595, 0.0
        %1597 = vadd.xlane.f32.xlu0 %v1596
        %v1598 = vpop.xlane.xlu0 %1597
        %v1599 = vrcp.pop %v1598
        %v1600 = vmul.f32 %v1595, %v1599
        %v1601 = vmul.f32 %v1600, %v861
        %1602 = vrot.lane.b32.xlu0 %v1601, 8
        %v1603 = vpop.permute.xlu0 %1602
        %v1604 = vsel %vm968, %v1603, %v1601
        %1605 = vrot.lane.b32.xlu0 %v1604, 8
        %v1606 = vpop.permute.xlu0 %1605
        %v1607 = vsel %vm968, %v1606, %v1601
        %1609 = vrot.lane.b32.xlu0 %v1607, 121
        %v1610 = vpop.permute.xlu0 %1609
        %v1612 = vsel %vm975, 0.0, %v1610
        %v1613 = vadd.f32 %v1601, %v1612
        %1614 = vrot.lane.b32.xlu0 %v1613, 8
        %v1615 = vpop.permute.xlu0 %1614
        %v1616 = vsel %vm968, %v1615, %v1613
        %1617 = vrot.lane.b32.xlu0 %v1616, 8
        %v1618 = vpop.permute.xlu0 %1617
        %v1619 = vsel %vm968, %v1618, %v1613
        %1621 = vrot.lane.b32.xlu0 %v1619, 122
        %v1622 = vpop.permute.xlu0 %1621
        %v1624 = vsel %vm988, 0.0, %v1622
        %v1625 = vadd.f32 %v1613, %v1624
        %1626 = vrot.lane.b32.xlu0 %v1625, 8
        %v1627 = vpop.permute.xlu0 %1626
        %v1628 = vsel %vm968, %v1627, %v1625
        %1629 = vrot.lane.b32.xlu0 %v1628, 8
        %v1630 = vpop.permute.xlu0 %1629
        %v1631 = vsel %vm968, %v1630, %v1625
        %1633 = vrot.lane.b32.xlu0 %v1631, 124
        %v1634 = vpop.permute.xlu0 %1633
        %v1636 = vsel %vm1001, 0.0, %v1634
        %v1637 = vadd.f32 %v1625, %v1636
        %v1638 = vsel %vm877, %v1601, 0.0
        %1639 = vadd.xlane.f32.xlu0 %v1638
        %v1640 = vpop.xlane.xlu0 %1639
        %v1641 = vsub.f32 %v1640, %v1637
        %v1642 = vmul.f32 %v1641, %v873
        %v1643 = vmax.f32 %v1642, 0.0
        %v1644 = vrsqrt.pop %v1643
        %v1645 = vmul.f32 %v1643, %v1644
        %vm1646 = vcmp.eq.f32.partialorder %v1643, inf
        %v1647 = vsel %vm1646, %v1643, %v1645
        %vm1648 = vcmp.eq.f32.partialorder %v1643, 0.0
        %v1649 = vand.u32 %v1643, 2147483648
        %v1650 = vsel %vm1648, %v1649, %v1647
        %s1651 = sld [smem:[#allocation6 + $0x2]]
        %v1652 = vstv %s1651
        %v1653 = vmul.f32 %v1650, %v1652
        %v1654 = vmul.f32 %v1653, 1.442695
        %v1655 = vpow.pop %v1654
        %v1656 = vmax.f32 %v1655, 1e-05
        %v1657 = vmul.f32 %v1588, %v1656
        %v1658 = vsel %vm862, -1e+32, %v1657
        %v1659 = vsel %vm877, %v1658, -inf
        %1660 = vmax.xlane.f32.xlu0 %v1659
        %v1661 = vpop.xlane.xlu0 %1660
        %v1662 = vsub.f32 %v1658, %v1661
        %v1663 = vmul.f32 %v1662, 1.442695
        %v1664 = vpow.pop %v1663
        %v1665 = vsel %vm877, %v1664, 0.0
        %1666 = vadd.xlane.f32.xlu0 %v1665
        %v1667 = vpop.xlane.xlu0 %1666
        %v1668 = vrcp.pop %v1667
        %v1669 = vmul.f32 %v1664, %v1668
        %v1670 = vsel %vm874, 0.0, %v1669
        %1672 = vrot.lane.b32.xlu0 %v1508, 112
        %v1673 = vpop.permute.xlu0 %1672
        %v1676 = vsel %vm877, %v1670, 0
        %1678 = vmatprep.subr.mxu0 0.0
        %1679 = vmatpush1.msra.mxu0 %v1673
        %1680 = vmatprep.subr.mxu0 0.0
        %1681 = vmatpush1.msra.mxu0 0.0
        %1682 = vmatprep.subr.mxu0 0.0
        %1683 = vmatpush1.msra.mxu0 0.0
        %1684 = vmatprep.subr.mxu0 0.0
        %1685 = vmatpush1.msra.mxu0 0.0
        %1686 = vmatprep.subr.mxu0 0.0
        %1687 = vmatpush1.msra.mxu0 0.0
        %1688 = vmatprep.subr.mxu0 0.0
        %1689 = vmatpush1.msra.mxu0 0.0
        %1690 = vmatprep.subr.mxu0 0.0
        %1691 = vmatpush1.msra.mxu0 0.0
        %1692 = vmatprep.subr.mxu0 0.0
        %1693 = vmatpush1.msra.mxu0 0.0
        %1694 = vmatprep.subr.mxu0 0.0
        %1695 = vmatpush1.msra.mxu0 0.0
        %1696 = vmatprep.subr.mxu0 0.0
        %1697 = vmatpush1.msra.mxu0 0.0
        %1698 = vmatprep.subr.mxu0 0.0
        %1699 = vmatpush1.msra.mxu0 0.0
        %1700 = vmatprep.subr.mxu0 0.0
        %1701 = vmatpush1.msra.mxu0 0.0
        %1702 = vmatprep.subr.mxu0 0.0
        %1703 = vmatpush1.msra.mxu0 0.0
        %1704 = vmatprep.subr.mxu0 0.0
        %1705 = vmatpush1.msra.mxu0 0.0
        %1706 = vmatprep.subr.mxu0 0.0
        %1707 = vmatpush1.msra.mxu0 0.0
        %1708 = vmatprep.subr.mxu0 0.0
        %1709 = vmatpush1.msra.mxu0 0.0
        %1710 = vmatprep.subr.mxu0 0.0
        %1711 = vmatpush1.msra.mxu0 0.0
        %1712 = vmatprep.subr.mxu0 0.0
        %1713 = vmatpush1.msra.mxu0 0.0
        %1714 = vmatprep.subr.mxu0 0.0
        %1715 = vmatpush1.msra.mxu0 0.0
        %1716 = vmatprep.subr.mxu0 0.0
        %1717 = vmatpush1.msra.mxu0 0.0
        %1718 = vmatprep.subr.mxu0 0.0
        %1719 = vmatpush1.msra.mxu0 0.0
        %1720 = vmatprep.subr.mxu0 0.0
        %1721 = vmatpush1.msra.mxu0 0.0
        %1722 = vmatprep.subr.mxu0 0.0
        %1723 = vmatpush1.msra.mxu0 0.0
        %1724 = vmatprep.subr.mxu0 0.0
        %1725 = vmatpush1.msra.mxu0 0.0
        %1726 = vmatprep.subr.mxu0 0.0
        %1727 = vmatpush1.msra.mxu0 0.0
        %1728 = vmatprep.subr.mxu0 0.0
        %1729 = vmatpush1.msra.mxu0 0.0
        %1730 = vmatprep.subr.mxu0 0.0
        %1731 = vmatpush1.msra.mxu0 0.0
        %1732 = vmatprep.subr.mxu0 0.0
        %1733 = vmatpush1.msra.mxu0 0.0
        %1734 = vmatprep.subr.mxu0 0.0
        %1735 = vmatpush1.msra.mxu0 0.0
        %1736 = vmatprep.subr.mxu0 0.0
        %1737 = vmatpush1.msra.mxu0 0.0
        %1738 = vmatprep.subr.mxu0 0.0
        %1739 = vmatpush1.msra.mxu0 0.0
        %1740 = vmatprep.subr.mxu0 0.0
        %1741 = vmatpush1.msra.mxu0 0.0
        %1742 = vmatprep.mubr.f32.mxu0 0.0
        %1743 = vmatmul.mubr.f32.gmra.mrb[0].mxu0 %v1676
        %v1744 = vpop.f32.mrb[0].mxu0
        %v1745 = vadd.f32 0.0, %v1744
        %v1746 = vpop.f32.mrb[0].mxu0
        %1747 = vdwg.mxu0
        %v1748 = vld [vmem:[#allocation18 + $0x10] sm:$0xff]
        %v1750 = vsel %vm877, %v1745, 0
        %1752 = vmatprep.subr.mxu0 0.0
        %1753 = vmatpush1.msra.mxu0 %v1748
        %1754 = vmatprep.subr.mxu0 0.0
        %1755 = vmatpush1.msra.mxu0 0.0
        %1756 = vmatprep.subr.mxu0 0.0
        %1757 = vmatpush1.msra.mxu0 0.0
        %1758 = vmatprep.subr.mxu0 0.0
        %1759 = vmatpush1.msra.mxu0 0.0
        %1760 = vmatprep.subr.mxu0 0.0
        %1761 = vmatpush1.msra.mxu0 0.0
        %1762 = vmatprep.subr.mxu0 0.0
        %1763 = vmatpush1.msra.mxu0 0.0
        %1764 = vmatprep.subr.mxu0 0.0
        %1765 = vmatpush1.msra.mxu0 0.0
        %1766 = vmatprep.subr.mxu0 0.0
        %1767 = vmatpush1.msra.mxu0 0.0
        %1768 = vmatprep.subr.mxu0 0.0
        %1769 = vmatpush1.msra.mxu0 0.0
        %1770 = vmatprep.subr.mxu0 0.0
        %1771 = vmatpush1.msra.mxu0 0.0
        %1772 = vmatprep.subr.mxu0 0.0
        %1773 = vmatpush1.msra.mxu0 0.0
        %1774 = vmatprep.subr.mxu0 0.0
        %1775 = vmatpush1.msra.mxu0 0.0
        %1776 = vmatprep.subr.mxu0 0.0
        %1777 = vmatpush1.msra.mxu0 0.0
        %1778 = vmatprep.subr.mxu0 0.0
        %1779 = vmatpush1.msra.mxu0 0.0
        %1780 = vmatprep.subr.mxu0 0.0
        %1781 = vmatpush1.msra.mxu0 0.0
        %1782 = vmatprep.subr.mxu0 0.0
        %1783 = vmatpush1.msra.mxu0 0.0
        %1784 = vmatprep.subr.mxu0 0.0
        %1785 = vmatpush1.msra.mxu0 0.0
        %1786 = vmatprep.subr.mxu0 0.0
        %1787 = vmatpush1.msra.mxu0 0.0
        %1788 = vmatprep.subr.mxu0 0.0
        %1789 = vmatpush1.msra.mxu0 0.0
        %1790 = vmatprep.subr.mxu0 0.0
        %1791 = vmatpush1.msra.mxu0 0.0
        %1792 = vmatprep.subr.mxu0 0.0
        %1793 = vmatpush1.msra.mxu0 0.0
        %1794 = vmatprep.subr.mxu0 0.0
        %1795 = vmatpush1.msra.mxu0 0.0
        %1796 = vmatprep.subr.mxu0 0.0
        %1797 = vmatpush1.msra.mxu0 0.0
        %1798 = vmatprep.subr.mxu0 0.0
        %1799 = vmatpush1.msra.mxu0 0.0
        %1800 = vmatprep.subr.mxu0 0.0
        %1801 = vmatpush1.msra.mxu0 0.0
        %1802 = vmatprep.subr.mxu0 0.0
        %1803 = vmatpush1.msra.mxu0 0.0
        %1804 = vmatprep.subr.mxu0 0.0
        %1805 = vmatpush1.msra.mxu0 0.0
        %1806 = vmatprep.subr.mxu0 0.0
        %1807 = vmatpush1.msra.mxu0 0.0
        %1808 = vmatprep.subr.mxu0 0.0
        %1809 = vmatpush1.msra.mxu0 0.0
        %1810 = vmatprep.subr.mxu0 0.0
        %1811 = vmatpush1.msra.mxu0 0.0
        %1812 = vmatprep.subr.mxu0 0.0
        %1813 = vmatpush1.msra.mxu0 0.0
        %1814 = vmatprep.subr.mxu0 0.0
        %1815 = vmatpush1.msra.mxu0 0.0
        %1816 = vmatprep.mubr.f32.mxu0 0.0
        %1817 = vmatmul.mubr.f32.gmra.mrb[0].mxu0 %v1750
        %v1818 = vpop.f32.mrb[0].mxu0
        %v1819 = vadd.f32 0.0, %v1818
        %v1820 = vpop.f32.mrb[0].mxu0
        %1821 = vdwg.mxu0
        %v1822 = vld [vmem:[#allocation4] sm:$0xff]
        %v1823 = vadd.f32 %v1822, %v1819
        %1824 = vst.msk [vmem:[#allocation4] sm:$0xff] %vm787, %v1823
        %v1825 = vld [vmem:[#allocation2] sm:$0xff]
        %v1826 = vld [vmem:[#allocation3] sm:$0xff]
        %1827 = vrot.lane.b32.xlu0 %v858, 104
        %v1828 = vpop.permute.xlu0 %1827
        %1830 = vrot.lane.b32.xlu0 %v1825, 104
        %v1831 = vpop.permute.xlu0 %1830
        %v1832 = vsel %vm877, %v1828, 0
        %v1834 = vsel %vm877, %v1831, 0
        %1836 = vmatprep.subr.mxu0 0.0
        %1837 = vmatpush1.xpose.msra.mxu0 %v1834
        %1838 = vmatprep.subr.mxu0 0.0
        %1839 = vmatpush1.xpose.msra.mxu0 0.0
        %1840 = vmatprep.subr.mxu0 0.0
        %1841 = vmatpush1.xpose.msra.mxu0 0.0
        %1842 = vmatprep.subr.mxu0 0.0
        %1843 = vmatpush1.xpose.msra.mxu0 0.0
        %1844 = vmatprep.subr.mxu0 0.0
        %1845 = vmatpush1.xpose.msra.mxu0 0.0
        %1846 = vmatprep.subr.mxu0 0.0
        %1847 = vmatpush1.xpose.msra.mxu0 0.0
        %1848 = vmatprep.subr.mxu0 0.0
        %1849 = vmatpush1.xpose.msra.mxu0 0.0
        %1850 = vmatprep.subr.mxu0 0.0
        %1851 = vmatpush1.xpose.msra.mxu0 0.0
        %1852 = vmatprep.subr.mxu0 0.0
        %1853 = vmatpush1.xpose.msra.mxu0 0.0
        %1854 = vmatprep.subr.mxu0 0.0
        %1855 = vmatpush1.xpose.msra.mxu0 0.0
        %1856 = vmatprep.subr.mxu0 0.0
        %1857 = vmatpush1.xpose.msra.mxu0 0.0
        %1858 = vmatprep.subr.mxu0 0.0
        %1859 = vmatpush1.xpose.msra.mxu0 0.0
        %1860 = vmatprep.subr.mxu0 0.0
        %1861 = vmatpush1.xpose.msra.mxu0 0.0
        %1862 = vmatprep.subr.mxu0 0.0
        %1863 = vmatpush1.xpose.msra.mxu0 0.0
        %1864 = vmatprep.subr.mxu0 0.0
        %1865 = vmatpush1.xpose.msra.mxu0 0.0
        %1866 = vmatprep.subr.mxu0 0.0
        %1867 = vmatpush1.xpose.msra.mxu0 0.0
        %1868 = vmatprep.subr.mxu0 0.0
        %1869 = vmatpush1.xpose.msra.mxu0 0.0
        %1870 = vmatprep.subr.mxu0 0.0
        %1871 = vmatpush1.xpose.msra.mxu0 0.0
        %1872 = vmatprep.subr.mxu0 0.0
        %1873 = vmatpush1.xpose.msra.mxu0 0.0
        %1874 = vmatprep.subr.mxu0 0.0
        %1875 = vmatpush1.xpose.msra.mxu0 0.0
        %1876 = vmatprep.subr.mxu0 0.0
        %1877 = vmatpush1.xpose.msra.mxu0 0.0
        %1878 = vmatprep.subr.mxu0 0.0
        %1879 = vmatpush1.xpose.msra.mxu0 0.0
        %1880 = vmatprep.subr.mxu0 0.0
        %1881 = vmatpush1.xpose.msra.mxu0 0.0
        %1882 = vmatprep.subr.mxu0 0.0
        %1883 = vmatpush1.xpose.msra.mxu0 0.0
        %1884 = vmatprep.subr.mxu0 0.0
        %1885 = vmatpush1.xpose.msra.mxu0 0.0
        %1886 = vmatprep.subr.mxu0 0.0
        %1887 = vmatpush1.xpose.msra.mxu0 0.0
        %1888 = vmatprep.subr.mxu0 0.0
        %1889 = vmatpush1.xpose.msra.mxu0 0.0
        %1890 = vmatprep.subr.mxu0 0.0
        %1891 = vmatpush1.xpose.msra.mxu0 0.0
        %1892 = vmatprep.subr.mxu0 0.0
        %1893 = vmatpush1.xpose.msra.mxu0 0.0
        %1894 = vmatprep.subr.mxu0 0.0
        %1895 = vmatpush1.xpose.msra.mxu0 0.0
        %1896 = vmatprep.subr.mxu0 0.0
        %1897 = vmatpush1.xpose.msra.mxu0 0.0
        %1898 = vmatprep.subr.mxu0 0.0
        %1899 = vmatpush1.xpose.msra.mxu0 0.0
        %1900 = vmatprep.mubr.f32.mxu0 0.0
        %1901 = vmatmul.mubr.f32.gmra.mrb[0].mxu0 %v1832
        %v1902 = vpop.f32.mrb[0].mxu0
        %v1903 = vadd.f32 0.0, %v1902
        %v1904 = vpop.f32.mrb[0].mxu0
        %1905 = vdwg.mxu0
        %v1906 = vmul.f32 %v1903, 0.35355338
        %v1907 = vsel %vm862, -1e+32, %v1906
        %v1908 = vsel %vm877, %v1907, -inf
        %1909 = vmax.xlane.f32.xlu0 %v1908
        %v1910 = vpop.xlane.xlu0 %1909
        %v1911 = vsub.f32 %v1907, %v1910
        %v1912 = vmul.f32 %v1911, 1.442695
        %v1913 = vpow.pop %v1912
        %v1914 = vsel %vm877, %v1913, 0.0
        %1915 = vadd.xlane.f32.xlu0 %v1914
        %v1916 = vpop.xlane.xlu0 %1915
        %v1917 = vrcp.pop %v1916
        %v1918 = vmul.f32 %v1913, %v1917
        %v1919 = vmul.f32 %v1918, %v861
        %1920 = vrot.lane.b32.xlu0 %v1919, 8
        %v1921 = vpop.permute.xlu0 %1920
        %v1922 = vsel %vm968, %v1921, %v1919
        %1923 = vrot.lane.b32.xlu0 %v1922, 8
        %v1924 = vpop.permute.xlu0 %1923
        %v1925 = vsel %vm968, %v1924, %v1919
        %1927 = vrot.lane.b32.xlu0 %v1925, 121
        %v1928 = vpop.permute.xlu0 %1927
        %v1930 = vsel %vm975, 0.0, %v1928
        %v1931 = vadd.f32 %v1919, %v1930
        %1932 = vrot.lane.b32.xlu0 %v1931, 8
        %v1933 = vpop.permute.xlu0 %1932
        %v1934 = vsel %vm968, %v1933, %v1931
        %1935 = vrot.lane.b32.xlu0 %v1934, 8
        %v1936 = vpop.permute.xlu0 %1935
        %v1937 = vsel %vm968, %v1936, %v1931
        %1939 = vrot.lane.b32.xlu0 %v1937, 122
        %v1940 = vpop.permute.xlu0 %1939
        %v1942 = vsel %vm988, 0.0, %v1940
        %v1943 = vadd.f32 %v1931, %v1942
        %1944 = vrot.lane.b32.xlu0 %v1943, 8
        %v1945 = vpop.permute.xlu0 %1944
        %v1946 = vsel %vm968, %v1945, %v1943
        %1947 = vrot.lane.b32.xlu0 %v1946, 8
        %v1948 = vpop.permute.xlu0 %1947
        %v1949 = vsel %vm968, %v1948, %v1943
        %1951 = vrot.lane.b32.xlu0 %v1949, 124
        %v1952 = vpop.permute.xlu0 %1951
        %v1954 = vsel %vm1001, 0.0, %v1952
        %v1955 = vadd.f32 %v1943, %v1954
        %v1956 = vsel %vm877, %v1919, 0.0
        %1957 = vadd.xlane.f32.xlu0 %v1956
        %v1958 = vpop.xlane.xlu0 %1957
        %v1959 = vsub.f32 %v1958, %v1955
        %v1960 = vmul.f32 %v1959, %v873
        %v1961 = vmax.f32 %v1960, 0.0
        %v1962 = vrsqrt.pop %v1961
        %v1963 = vmul.f32 %v1961, %v1962
        %vm1964 = vcmp.eq.f32.partialorder %v1961, inf
        %v1965 = vsel %vm1964, %v1961, %v1963
        %vm1966 = vcmp.eq.f32.partialorder %v1961, 0.0
        %v1967 = vand.u32 %v1961, 2147483648
        %v1968 = vsel %vm1966, %v1967, %v1965
        %s1969 = sld [smem:[#allocation6 + $0x3]]
        %v1970 = vstv %s1969
        %v1971 = vmul.f32 %v1968, %v1970
        %v1972 = vmul.f32 %v1971, 1.442695
        %v1973 = vpow.pop %v1972
        %v1974 = vmax.f32 %v1973, 1e-05
        %v1975 = vmul.f32 %v1906, %v1974
        %v1976 = vsel %vm862, -1e+32, %v1975
        %v1977 = vsel %vm877, %v1976, -inf
        %1978 = vmax.xlane.f32.xlu0 %v1977
        %v1979 = vpop.xlane.xlu0 %1978
        %v1980 = vsub.f32 %v1976, %v1979
        %v1981 = vmul.f32 %v1980, 1.442695
        %v1982 = vpow.pop %v1981
        %v1983 = vsel %vm877, %v1982, 0.0
        %1984 = vadd.xlane.f32.xlu0 %v1983
        %v1985 = vpop.xlane.xlu0 %1984
        %v1986 = vrcp.pop %v1985
        %v1987 = vmul.f32 %v1982, %v1986
        %v1988 = vsel %vm874, 0.0, %v1987
        %1990 = vrot.lane.b32.xlu0 %v1826, 104
        %v1991 = vpop.permute.xlu0 %1990
        %v1994 = vsel %vm877, %v1988, 0
        %1996 = vmatprep.subr.mxu0 0.0
        %1997 = vmatpush1.msra.mxu0 %v1991
        %1998 = vmatprep.subr.mxu0 0.0
        %1999 = vmatpush1.msra.mxu0 0.0
        %2000 = vmatprep.subr.mxu0 0.0
        %2001 = vmatpush1.msra.mxu0 0.0
        %2002 = vmatprep.subr.mxu0 0.0
        %2003 = vmatpush1.msra.mxu0 0.0
        %2004 = vmatprep.subr.mxu0 0.0
        %2005 = vmatpush1.msra.mxu0 0.0
        %2006 = vmatprep.subr.mxu0 0.0
        %2007 = vmatpush1.msra.mxu0 0.0
        %2008 = vmatprep.subr.mxu0 0.0
        %2009 = vmatpush1.msra.mxu0 0.0
        %2010 = vmatprep.subr.mxu0 0.0
        %2011 = vmatpush1.msra.mxu0 0.0
        %2012 = vmatprep.subr.mxu0 0.0
        %2013 = vmatpush1.msra.mxu0 0.0
        %2014 = vmatprep.subr.mxu0 0.0
        %2015 = vmatpush1.msra.mxu0 0.0
        %2016 = vmatprep.subr.mxu0 0.0
        %2017 = vmatpush1.msra.mxu0 0.0
        %2018 = vmatprep.subr.mxu0 0.0
        %2019 = vmatpush1.msra.mxu0 0.0
        %2020 = vmatprep.subr.mxu0 0.0
        %2021 = vmatpush1.msra.mxu0 0.0
        %2022 = vmatprep.subr.mxu0 0.0
        %2023 = vmatpush1.msra.mxu0 0.0
        %2024 = vmatprep.subr.mxu0 0.0
        %2025 = vmatpush1.msra.mxu0 0.0
        %2026 = vmatprep.subr.mxu0 0.0
        %2027 = vmatpush1.msra.mxu0 0.0
        %2028 = vmatprep.subr.mxu0 0.0
        %2029 = vmatpush1.msra.mxu0 0.0
        %2030 = vmatprep.subr.mxu0 0.0
        %2031 = vmatpush1.msra.mxu0 0.0
        %2032 = vmatprep.subr.mxu0 0.0
        %2033 = vmatpush1.msra.mxu0 0.0
        %2034 = vmatprep.subr.mxu0 0.0
        %2035 = vmatpush1.msra.mxu0 0.0
        %2036 = vmatprep.subr.mxu0 0.0
        %2037 = vmatpush1.msra.mxu0 0.0
        %2038 = vmatprep.subr.mxu0 0.0
        %2039 = vmatpush1.msra.mxu0 0.0
        %2040 = vmatprep.subr.mxu0 0.0
        %2041 = vmatpush1.msra.mxu0 0.0
        %2042 = vmatprep.subr.mxu0 0.0
        %2043 = vmatpush1.msra.mxu0 0.0
        %2044 = vmatprep.subr.mxu0 0.0
        %2045 = vmatpush1.msra.mxu0 0.0
        %2046 = vmatprep.subr.mxu0 0.0
        %2047 = vmatpush1.msra.mxu0 0.0
        %2048 = vmatprep.subr.mxu0 0.0
        %2049 = vmatpush1.msra.mxu0 0.0
        %2050 = vmatprep.subr.mxu0 0.0
        %2051 = vmatpush1.msra.mxu0 0.0
        %2052 = vmatprep.subr.mxu0 0.0
        %2053 = vmatpush1.msra.mxu0 0.0
        %2054 = vmatprep.subr.mxu0 0.0
        %2055 = vmatpush1.msra.mxu0 0.0
        %2056 = vmatprep.subr.mxu0 0.0
        %2057 = vmatpush1.msra.mxu0 0.0
        %2058 = vmatprep.subr.mxu0 0.0
        %2059 = vmatpush1.msra.mxu0 0.0
        %2060 = vmatprep.mubr.f32.mxu0 0.0
        %2061 = vmatmul.mubr.f32.gmra.mrb[0].mxu0 %v1994
        %v2062 = vpop.f32.mrb[0].mxu0
        %v2063 = vadd.f32 0.0, %v2062
        %v2064 = vpop.f32.mrb[0].mxu0
        %2065 = vdwg.mxu0
        %v2066 = vld [vmem:[#allocation18 + $0x18] sm:$0xff]
        %v2068 = vsel %vm877, %v2063, 0
        %2070 = vmatprep.subr.mxu0 0.0
        %2071 = vmatpush1.msra.mxu0 %v2066
        %2072 = vmatprep.subr.mxu0 0.0
        %2073 = vmatpush1.msra.mxu0 0.0
        %2074 = vmatprep.subr.mxu0 0.0
        %2075 = vmatpush1.msra.mxu0 0.0
        %2076 = vmatprep.subr.mxu0 0.0
        %2077 = vmatpush1.msra.mxu0 0.0
        %2078 = vmatprep.subr.mxu0 0.0
        %2079 = vmatpush1.msra.mxu0 0.0
        %2080 = vmatprep.subr.mxu0 0.0
        %2081 = vmatpush1.msra.mxu0 0.0
        %2082 = vmatprep.subr.mxu0 0.0
        %2083 = vmatpush1.msra.mxu0 0.0
        %2084 = vmatprep.subr.mxu0 0.0
        %2085 = vmatpush1.msra.mxu0 0.0
        %2086 = vmatprep.subr.mxu0 0.0
        %2087 = vmatpush1.msra.mxu0 0.0
        %2088 = vmatprep.subr.mxu0 0.0
        %2089 = vmatpush1.msra.mxu0 0.0
        %2090 = vmatprep.subr.mxu0 0.0
        %2091 = vmatpush1.msra.mxu0 0.0
        %2092 = vmatprep.subr.mxu0 0.0
        %2093 = vmatpush1.msra.mxu0 0.0
        %2094 = vmatprep.subr.mxu0 0.0
        %2095 = vmatpush1.msra.mxu0 0.0
        %2096 = vmatprep.subr.mxu0 0.0
        %2097 = vmatpush1.msra.mxu0 0.0
        %2098 = vmatprep.subr.mxu0 0.0
        %2099 = vmatpush1.msra.mxu0 0.0
        %2100 = vmatprep.subr.mxu0 0.0
        %2101 = vmatpush1.msra.mxu0 0.0
        %2102 = vmatprep.subr.mxu0 0.0
        %2103 = vmatpush1.msra.mxu0 0.0
        %2104 = vmatprep.subr.mxu0 0.0
        %2105 = vmatpush1.msra.mxu0 0.0
        %2106 = vmatprep.subr.mxu0 0.0
        %2107 = vmatpush1.msra.mxu0 0.0
        %2108 = vmatprep.subr.mxu0 0.0
        %2109 = vmatpush1.msra.mxu0 0.0
        %2110 = vmatprep.subr.mxu0 0.0
        %2111 = vmatpush1.msra.mxu0 0.0
        %2112 = vmatprep.subr.mxu0 0.0
        %2113 = vmatpush1.msra.mxu0 0.0
        %2114 = vmatprep.subr.mxu0 0.0
        %2115 = vmatpush1.msra.mxu0 0.0
        %2116 = vmatprep.subr.mxu0 0.0
        %2117 = vmatpush1.msra.mxu0 0.0
        %2118 = vmatprep.subr.mxu0 0.0
        %2119 = vmatpush1.msra.mxu0 0.0
        %2120 = vmatprep.subr.mxu0 0.0
        %2121 = vmatpush1.msra.mxu0 0.0
        %2122 = vmatprep.subr.mxu0 0.0
        %2123 = vmatpush1.msra.mxu0 0.0
        %2124 = vmatprep.subr.mxu0 0.0
        %2125 = vmatpush1.msra.mxu0 0.0
        %2126 = vmatprep.subr.mxu0 0.0
        %2127 = vmatpush1.msra.mxu0 0.0
        %2128 = vmatprep.subr.mxu0 0.0
        %2129 = vmatpush1.msra.mxu0 0.0
        %2130 = vmatprep.subr.mxu0 0.0
        %2131 = vmatpush1.msra.mxu0 0.0
        %2132 = vmatprep.subr.mxu0 0.0
        %2133 = vmatpush1.msra.mxu0 0.0
        %2134 = vmatprep.mubr.f32.mxu0 0.0
        %2135 = vmatmul.mubr.f32.gmra.mrb[0].mxu0 %v2068
        %v2136 = vpop.f32.mrb[0].mxu0
        %v2137 = vadd.f32 0.0, %v2136
        %v2138 = vpop.f32.mrb[0].mxu0
        %2139 = vdwg.mxu0
        %v2140 = vld [vmem:[#allocation4] sm:$0xff]
        %v2141 = vadd.f32 %v2140, %v2137
        %2142 = vst.msk [vmem:[#allocation4] sm:$0xff] %vm787, %v2141
        %v2143 = vld [vmem:[#allocation4] sm:$0xff]
        %v2144 = vld [vmem:[%s11] sm:$0x1]
        %v2146 = vlaneseq
        %v2147 = vshrl.u32 %v2146, 7
        %v2148 = vsub.s32 0, %v2147
        %v2149 = vrot.slane %v2144, %v2148
        %v2151 = vadd.f32 %v2143, %v2149
        %2152 = vst.msk [vmem:[%s592] sm:$0xff] %vm787, %v2151
        %s2153 = sand.u32 %s335, 1
        %s2154 = scalar_lea.sflag [#allocation9], %s2153
        %s2155 = sand.u32 %s335, 1
        %s2156 = smul.addr %s2155, 8
        %s2157 = scalar_lea.vmem [#allocation19], %s2156
        // Predicated region
        $region101: #{tpu_custom_call.1} parent=67 // pred_check
          %p2158 = pneg %p345
        $region102: #{tpu_custom_call.1} parent=67 // pred_check_branch
          %2160 = sbr.rel (%p2158) target = $region104
        $region103: #{tpu_custom_call.1} parent=67 // pred_region
          %s2162 = ssub.s32 128, 128
          %2163 = vsyncadd %s2154, %s2162
          %s2164 = sadd.s32 %s44, %s43
          %s2165 = smul.addr %s2164, 128
          %s2166 = scalar_lea.hbm %s13, %s2165
          %s2168 = sshll.u32 %s2157, 4
          %s2169 = int_to_ptr.vmem [resolvable:$true] %s2168
          %2171 = dma.vmem_to_hbm [thread:$0]  %s2169, 128, %s2166, %s2154
        $region104: #{tpu_custom_call.1} parent=67 // pred_fallthru
          _
      $region68: #{tpu_custom_call.1} parent=5 // pred_fallthru
        _
      %p2172 = scmp.le.s32.totalorder 2, %s34
      // Predicated region
      $region105: #{tpu_custom_call.1} parent=5 // pred_check
        %p2173 = pneg %p2172
      $region106: #{tpu_custom_call.1} parent=5 // pred_check_branch
        %2175 = sbr.rel (%p2173) target = $region108
      $region107: #{tpu_custom_call.1} parent=5 // pred_region
        %s2176 = ssub.s32 %s34, 2
        // Predicated region
        $region109: #{tpu_custom_call.1} parent=107 // pred_check
          %p2177 = pneg %p351
        $region110: #{tpu_custom_call.1} parent=107 // pred_check_branch
          %2179 = sbr.rel (%p2177) target = $region112
        $region111: #{tpu_custom_call.1} parent=107 // pred_region
          %s2180 = sand.u32 %s336, 1
          %s2181 = scalar_lea.sflag [#allocation9], %s2180
          %s2182 = sand.u32 %s336, 1
          %s2183 = smul.addr %s2182, 8
          %s2184 = scalar_lea.vmem [#allocation19], %s2183
          %2185 = dma.done %s2181, 128
        $region112: #{tpu_custom_call.1} parent=107 // pred_fallthru
          _
      $region108: #{tpu_custom_call.1} parent=5 // pred_fallthru
        _
    $region6: #{tpu_custom_call.1} parent=1 // loop_footer
      %s38 = sadd.s32 1, %s34
    $region7: #{tpu_custom_call.1} parent=1 // loop_footer_branch
      %33 = sbr.rel target = $region3
    $region8: #{tpu_custom_call.1} parent=1 // loop_exit
      _
    %2186 = vsyncpa [#allocation8], 1
    %s2187 = scalar_lea.sflag [#allocation8], 1
    %2188 = vsyncpa %s2187, 1
    %2189 = vsyncpa [#allocation11], 1
    %s2190 = scalar_lea.sflag [#allocation11], 1
    %2191 = vsyncpa %s2190, 1
    %2192 = vsyncpa [#allocation14], 1
    %2193 = vsyncpa [#allocation17], 1
    %2194 = vsyncpa [#allocation9], 1
    %s2195 = scalar_lea.sflag [#allocation9], 1
    %2196 = vsyncpa %s2195, 1

</llo_original>
